<compile_context>
chip_gen: v7x
topology: tpu7x:2x2x1
jax: 0.10.0
libtpu: 0.0.40
codegen_flags: <defaults>
</compile_context>

<pallas_src>
import numpy as np
import jax
import jax.numpy as jnp
from jax import lax
from jax.experimental import pallas as pl
from jax.experimental.pallas import tpu as pltpu


# --------------------------------------------------------------------------
# Kernel
# --------------------------------------------------------------------------
def _make_iter_mask_kernel(C8, Cin, W, LW):
    """LW = bb * H * W (the batch block is folded into the lane axis)."""

    def kernel(x_ref, tgt_ref, w0_ref, b0_ref, w1_ref, b1_ref,
               mask_ref, pool_ref, mhid_ref, head_ref):
        # Block shapes (per grid step):
        #   x_ref    : (1, Cin, LW + 2*(W+1))  zero-padded folded activations
        #   tgt_ref  : (1, 1, LW)              per-lane tgt_sparsity scale row
        #   w0_ref   : (9, C8, Cin)            3x3 conv weights, tap-major
        #   b0_ref   : (C8, 1)
        #   w1_ref   : (3, C8)                 1x1 head conv weights
        #   b1_ref   : (3, 1)
        #   mask_ref : (9, 1, LW)              0/1 edge masks per tap
        #   pool_ref : (LW, bb)                segment-mean matrix (1/HW)
        #   mhid_ref : (1, C8, LW)             out, lane-dense
        #   head_ref : (1, 3, bb)              out
        b0 = b0_ref[...]
        w1 = w1_ref[...]
        b1 = b1_ref[...]

        # 3x3 conv: 9 accumulated (C8, Cin) x (Cin, LW) MXU matmuls.  Each tap
        # is a static-offset lane slice of the padded block; the edge mask
        # (applied to the matmul result, which is 9x narrower than the tap)
        # zeros contributions that crossed an image edge or a batch-segment
        # boundary in the folded layout.
        acc = jnp.zeros((C8, LW), jnp.float32)
        for t in range(9):
            kh, kw = t // 3, t % 3
            tap = x_ref[0, :, pl.ds(kh * W + kw, LW)]             # (Cin, LW)
            part = jnp.dot(w0_ref[t], tap,
                           preferred_element_type=jnp.float32)    # (C8, LW)
            acc = acc + part * mask_ref[t]

        mhid = (acc + b0) * tgt_ref[0]                            # (C8, LW)
        mhid_ref[0] = mhid.astype(mhid_ref.dtype)

        # iter_mask_1: ReLU -> per-image mean pool -> 1x1 conv, fused.
        # head = (w1 @ relu) @ pool + b1  (each matmul keeps one large dim).
        relu = jnp.maximum(mhid, 0.0)
        proj = jnp.dot(w1, relu, preferred_element_type=jnp.float32)   # (3, LW)
        head = jnp.dot(proj, pool_ref[...],
                       preferred_element_type=jnp.float32) + b1        # (3, bb)
        head_ref[0] = head.astype(head_ref.dtype)

    return kernel


# --------------------------------------------------------------------------
# Host-side helpers (compile-time constants)
# --------------------------------------------------------------------------
def _edge_masks(H, W, bb):
    """(9, 1, bb*H*W) 0/1 masks.  Tap (kh, kw) must not read across an image
    edge; in the folded layout an out-of-image read also lands in the
    neighbouring batch segment, so the same masks cover both cases."""
    hw = H * W
    pos = np.arange(bb * hw)
    h_idx = (pos // W) % H
    w_idx = pos % W
    masks = []
    for kh in range(3):
        for kw in range(3):
            m = np.ones(bb * hw, np.float32)
            if kh == 0:
                m *= (h_idx != 0)
            elif kh == 2:
                m *= (h_idx != H - 1)
            if kw == 0:
                m *= (w_idx != 0)
            elif kw == 2:
                m *= (w_idx != W - 1)
            masks.append(m)
    return np.stack(masks)[:, None, :]


def _pool_matrix(HW, bb):
    """(bb*HW, bb) segment-mean matrix: column s has 1/HW on its own image."""
    return np.kron(np.eye(bb, dtype=np.float32),
                   np.full((HW, 1), 1.0 / HW, dtype=np.float32))


def _tensorcores_per_device():
    """Best-effort TensorCore count (v7x has 2); defaults to 1."""
    try:
        dev = jax.devices()[0]
        for attr in ("num_cores", "core_count"):
            v = getattr(dev, attr, None)
            if isinstance(v, int) and v > 0:
                return v
    except Exception:
        pass
    return 1


def _pick_batch_block(B, per_batch_bytes, *, cap=8,
                      vmem_budget_bytes=12 << 20, min_grid_steps=1):
    """Batch block from a VMEM budget (double-buffered), capped for per-step
    overhead amortization; keep >= min_grid_steps grid steps (v7x megacore)."""
    bb = max(1, min(cap, B, vmem_budget_bytes // max(1, 2 * per_batch_bytes)))
    while bb > 1 and pl.cdiv(B, bb) < min_grid_steps:
        bb -= 1
    return bb


# --------------------------------------------------------------------------
# Forward
# --------------------------------------------------------------------------
def iter_mask_forward(x_nchw, tgt_sparsity, w0, b0, w1, b1,
                      conv_dtype=jnp.float32, use_core_parallel=False,
                      vmem_budget_bytes=12 << 20):
    """x_nchw: (B, Cin, H, W); tgt_sparsity: scalar or (B,)-broadcastable.

    Returns (x, mhidden, inc) matching the PyTorch module:
        x: (B, 2, 1, 1), mhidden: (B, C8, H, W), inc: (B, 1, 1, 1).
    """
    B, Cin, H, W = x_nchw.shape
    C8 = w0.shape[0]
    HW = H * W
    PAD = W + 1
    elt = jnp.dtype(conv_dtype).itemsize

    per_batch_bytes = Cin * HW * elt + C8 * HW * 4 + HW * 4
    bb = _pick_batch_block(B, per_batch_bytes,
                           vmem_budget_bytes=vmem_budget_bytes,
                           min_grid_steps=_tensorcores_per_device())
    n_steps = pl.cdiv(B, bb)
    Bpad = n_steps * bb
    LW = bb * HW

    # ---- wrapper glue: no im2col, no NHWC transposes ----------------------
    x_flat = x_nchw.reshape(B, Cin, HW).astype(conv_dtype)
    tgt = jnp.broadcast_to(
        jnp.asarray(tgt_sparsity, jnp.float32).reshape(-1), (B,))
    if Bpad != B:
        x_flat = jnp.pad(x_flat, ((0, Bpad - B), (0, 0), (0, 0)))
        tgt = jnp.pad(tgt, (0, Bpad - B))
    # Fold the batch block into the lane axis and zero-pad the flat spatial
    # axis by W+1 on each side so every tap is an in-range static lane slice.
    x_folded = (x_flat.reshape(n_steps, bb, Cin, HW)
                .transpose(0, 2, 1, 3).reshape(n_steps, Cin, LW))
    x_folded = jnp.pad(x_folded, ((0, 0), (0, 0), (PAD, PAD)))
    tgt_rows = jnp.repeat(tgt, HW).reshape(n_steps, 1, LW)

    # Parameters: OIHW (C8, Cin, 3, 3) -> tap-major (9, C8, Cin).
    w0_taps = (jnp.transpose(w0, (2, 3, 0, 1)).reshape(9, C8, Cin)
               .astype(conv_dtype))
    b0_col = b0.reshape(C8, 1).astype(jnp.float32)
    w1_mat = w1.reshape(3, C8).astype(jnp.float32)
    b1_col = b1.reshape(3, 1).astype(jnp.float32)
    masks = jnp.asarray(_edge_masks(H, W, bb))          # (9, 1, LW) f32
    pool = jnp.asarray(_pool_matrix(HW, bb))            # (LW, bb)   f32

    kernel = _make_iter_mask_kernel(C8, Cin, W, LW)

    grid_spec = pltpu.PrefetchScalarGridSpec(
        num_scalar_prefetch=0,
        grid=(n_steps,),
        in_specs=[
            pl.BlockSpec((1, Cin, LW + 2 * PAD), lambda i: (i, 0, 0)),  # x
            pl.BlockSpec((1, 1, LW), lambda i: (i, 0, 0)),              # tgt row
            pl.BlockSpec((9, C8, Cin), lambda i: (0, 0, 0)),            # w0 taps
            pl.BlockSpec((C8, 1), lambda i: (0, 0)),                    # b0
            pl.BlockSpec((3, C8), lambda i: (0, 0)),                    # w1
            pl.BlockSpec((3, 1), lambda i: (0, 0)),                     # b1
            pl.BlockSpec((9, 1, LW), lambda i: (0, 0, 0)),              # masks
            pl.BlockSpec((LW, bb), lambda i: (0, 0)),                   # pool
        ],
        out_specs=[
            pl.BlockSpec((1, C8, LW), lambda i: (i, 0, 0)),             # mhidden
            pl.BlockSpec((1, 3, bb), lambda i: (i, 0, 0)),              # head
        ],
    )

    # Only set an explicit scoped-VMEM limit when the double-buffered working
    # set is large (keeps the default on small shapes, survives big H/W/Cin).
    x_block_bytes = Cin * (LW + 2 * PAD) * elt
    const_bytes = (9 * C8 * Cin * elt + 9 * LW * 4 + LW * bb * 4
                   + (C8 + 3 * C8 + 3) * 4)
    vmem_est = (2 * (x_block_bytes + C8 * LW * 4 + LW * 4 + 3 * bb * 4)
                + 2 * const_bytes)
    vmem_limit = int(min(2 * vmem_est, 40 << 20)) if vmem_est > (10 << 20) else None

    dim_sem = (pltpu.CORE_PARALLEL if use_core_parallel else "parallel",)

    mhid_folded, head_folded = pl.pallas_call(
        kernel,
        out_shape=(
            jax.ShapeDtypeStruct((n_steps, C8, LW), jnp.float32),
            jax.ShapeDtypeStruct((n_steps, 3, bb), jnp.float32),
        ),
        grid_spec=grid_spec,
        compiler_params=pltpu.CompilerParams(
            dimension_semantics=dim_sem,
            vmem_limit_bytes=vmem_limit),
    )(x_folded, tgt_rows, w0_taps, b0_col, w1_mat, b1_col, masks, pool)

    # ---- back to PyTorch NCHW conventions (only tiny tensors move) --------
    mhidden = (mhid_folded.reshape(n_steps, C8, bb, HW)
               .transpose(0, 2, 1, 3).reshape(Bpad, C8, H, W)[:B])
    head = head_folded.transpose(0, 2, 1).reshape(Bpad, 3)[:B]
    inc = head[:, :1].reshape(B, 1, 1, 1)
    x_out = head[:, 1:].reshape(B, 2, 1, 1)
    return x_out, mhidden, inc


# --------------------------------------------------------------------------
# Pure-JAX reference (mirrors the PyTorch module)
# --------------------------------------------------------------------------
def _reference(x_nchw, tgt_sparsity, w0, b0, w1, b1):
    B = x_nchw.shape[0]
    y = lax.conv_general_dilated(
        x_nchw, w0, window_strides=(1, 1), padding=((1, 1), (1, 1)),
        dimension_numbers=("NCHW", "OIHW", "NCHW"),
        precision=lax.Precision.HIGHEST)
    y = y + b0.reshape(1, -1, 1, 1)
    tgt = jnp.broadcast_to(jnp.asarray(tgt_sparsity, jnp.float32).reshape(-1),
                           (B,)).reshape(B, 1, 1, 1)
    mhidden = y * tgt
    z = jnp.maximum(mhidden, 0.0)
    z = jnp.mean(z, axis=(2, 3), keepdims=True)
    z = lax.conv_general_dilated(
        z, w1, window_strides=(1, 1), padding="VALID",
        dimension_numbers=("NCHW", "OIHW", "NCHW"),
        precision=lax.Precision.HIGHEST) + b1.reshape(1, -1, 1, 1)
    return z[:, 1:], mhidden, z[:, :1]


if __name__ == "__main__":
    # Small config: input_dim=32 -> C8 = input_dim // 8 = 4, Cin = 32 + 4 = 36.
    input_dim = 32
    C8 = input_dim // 8
    Cin = input_dim + C8
    B, H, W = 2, 16, 16

    key = jax.random.PRNGKey(0)
    k_x, k_w0, k_b0, k_w1, k_b1, k_t = jax.random.split(key, 6)

    x = jax.random.normal(k_x, (B, Cin, H, W), jnp.float32)
    tgt_sparsity = jax.random.uniform(k_t, (B,), jnp.float32, 0.1, 0.9)

    # Deterministic "parameters" (PyTorch OIHW conv weight shapes).
    w0 = jax.random.normal(k_w0, (C8, Cin, 3, 3), jnp.float32) * 0.05
    b0 = jax.random.normal(k_b0, (C8,), jnp.float32) * 0.05
    w1 = jax.random.normal(k_w1, (3, C8, 1, 1), jnp.float32) * 0.05
    b1 = jax.random.normal(k_b1, (3,), jnp.float32) * 0.05

    fwd = jax.jit(iter_mask_forward)
    x_out, mhidden, inc = jax.block_until_ready(
        fwd(x, tgt_sparsity, w0, b0, w1, b1))

    x_ref, mhid_ref, inc_ref = jax.block_until_ready(
        _reference(x, tgt_sparsity, w0, b0, w1, b1))

    assert x_out.shape == (B, 2, 1, 1) and inc.shape == (B, 1, 1, 1)
    assert mhidden.shape == (B, C8, H, W)
    # Tolerance allows for the TPU MXU's bf16-pass f32 matmul path in either
    # the kernel or the XLA reference; pass conv_dtype=jnp.bfloat16 to halve
    # the activation DMA stream at similarly relaxed tolerance.
    assert jnp.allclose(mhidden, mhid_ref, atol=1e-2, rtol=1e-2)
    assert jnp.allclose(x_out, x_ref, atol=1e-2, rtol=1e-2)
    assert jnp.allclose(inc, inc_ref, atol=1e-2, rtol=1e-2)

    print("KERNEL_OK")
</pallas_src>

<mosaic_0001>
module attributes {stable_mosaic.version = 11 : i64} {
  func.func @kernel(%arg0: i32, %arg1: memref<1x36x546xf32, #tpu.memory_space<vmem>>, %arg2: memref<1x1x512xf32, #tpu.memory_space<vmem>>, %arg3: memref<9x4x36xf32, #tpu.memory_space<vmem>>, %arg4: memref<4x1xf32, #tpu.memory_space<vmem>>, %arg5: memref<3x4xf32, #tpu.memory_space<vmem>>, %arg6: memref<3x1xf32, #tpu.memory_space<vmem>>, %arg7: memref<9x1x512xf32, #tpu.memory_space<vmem>>, %arg8: memref<512x2xf32, #tpu.memory_space<vmem>>, %arg9: memref<1x4x512xf32, #tpu.memory_space<vmem>>, %arg10: memref<1x3x2xf32, #tpu.memory_space<vmem>>) attributes {dimension_semantics = [#tpu.dimension_semantics<parallel>], iteration_bounds = array<i64: 1>, scalar_prefetch = 0 : i64, scratch_operands = 0 : i64, tpu.core_type = #tpu.core_type<tc>, window_params = [{transform_indices = @transform_0, window_bounds = array<i64: 1, 36, 546>}, {transform_indices = @transform_1, window_bounds = array<i64: 1, 1, 512>}, {pipeline_mode = #tpu.pipeline_mode<synchronous>, transform_indices = @transform_2, window_bounds = array<i64: 9, 4, 36>}, {pipeline_mode = #tpu.pipeline_mode<synchronous>, transform_indices = @transform_3, window_bounds = array<i64: 4, 1>}, {pipeline_mode = #tpu.pipeline_mode<synchronous>, transform_indices = @transform_4, window_bounds = array<i64: 3, 4>}, {pipeline_mode = #tpu.pipeline_mode<synchronous>, transform_indices = @transform_5, window_bounds = array<i64: 3, 1>}, {pipeline_mode = #tpu.pipeline_mode<synchronous>, transform_indices = @transform_6, window_bounds = array<i64: 9, 1, 512>}, {pipeline_mode = #tpu.pipeline_mode<synchronous>, transform_indices = @transform_7, window_bounds = array<i64: 512, 2>}, {transform_indices = @transform_8, window_bounds = array<i64: 1, 4, 512>}, {transform_indices = @transform_9, window_bounds = array<i64: 1, 3, 2>}]} {
    %c0 = arith.constant 0 : index
    %c0_0 = arith.constant 0 : index
    %0 = vector.load %arg4[%c0, %c0_0] : memref<4x1xf32, #tpu.memory_space<vmem>>, vector<4x1xf32>
    %c0_1 = arith.constant 0 : index
    %c0_2 = arith.constant 0 : index
    %1 = vector.load %arg5[%c0_1, %c0_2] : memref<3x4xf32, #tpu.memory_space<vmem>>, vector<3x4xf32>
    %c0_3 = arith.constant 0 : index
    %c0_4 = arith.constant 0 : index
    %2 = vector.load %arg6[%c0_3, %c0_4] : memref<3x1xf32, #tpu.memory_space<vmem>>, vector<3x1xf32>
    %cst = arith.constant 0.000000e+00 : f32
    %3 = vector.broadcast %cst : f32 to vector<4x512xf32>
    %c0_5 = arith.constant 0 : index
    %c0_6 = arith.constant 0 : index
    %c0_7 = arith.constant 0 : index
    %4 = vector.load %arg1[%c0_5, %c0_6, %c0_7] : memref<1x36x546xf32, #tpu.memory_space<vmem>>, vector<1x36x512xf32>
    %5 = vector.shape_cast %4 : vector<1x36x512xf32> to vector<36x512xf32>
    %c0_8 = arith.constant 0 : index
    %c0_9 = arith.constant 0 : index
    %c0_10 = arith.constant 0 : index
    %6 = vector.load %arg3[%c0_8, %c0_9, %c0_10] : memref<9x4x36xf32, #tpu.memory_space<vmem>>, vector<1x4x36xf32>
    %7 = vector.shape_cast %6 : vector<1x4x36xf32> to vector<4x36xf32>
    %cst_11 = arith.constant dense<0.000000e+00> : vector<4x512xf32>
    %8 = tpu.matmul %7, %5, %cst_11 {dimension_numbers = #tpu.dot_dimension_numbers<[1], [0], [0], [1], [0, 0, 1, 1], [], []>} : vector<4x36xf32>, vector<36x512xf32>, vector<4x512xf32> -> vector<4x512xf32>
    %c0_12 = arith.constant 0 : index
    %c0_13 = arith.constant 0 : index
    %c0_14 = arith.constant 0 : index
    %9 = vector.load %arg7[%c0_12, %c0_13, %c0_14] : memref<9x1x512xf32, #tpu.memory_space<vmem>>, vector<1x1x512xf32>
    %10 = vector.shape_cast %9 : vector<1x1x512xf32> to vector<1x512xf32>
    %11 = vector.broadcast %10 : vector<1x512xf32> to vector<4x512xf32>
    %12 = arith.mulf %8, %11 : vector<4x512xf32>
    %13 = arith.addf %3, %12 : vector<4x512xf32>
    %c0_15 = arith.constant 0 : index
    %c0_16 = arith.constant 0 : index
    %c1 = arith.constant 1 : index
    %14 = vector.load %arg1[%c0_15, %c0_16, %c1] : memref<1x36x546xf32, #tpu.memory_space<vmem>>, vector<1x36x512xf32>
    %15 = vector.shape_cast %14 : vector<1x36x512xf32> to vector<36x512xf32>
    %c1_17 = arith.constant 1 : index
    %c0_18 = arith.constant 0 : index
    %c0_19 = arith.constant 0 : index
    %16 = vector.load %arg3[%c1_17, %c0_18, %c0_19] : memref<9x4x36xf32, #tpu.memory_space<vmem>>, vector<1x4x36xf32>
    %17 = vector.shape_cast %16 : vector<1x4x36xf32> to vector<4x36xf32>
    %cst_20 = arith.constant dense<0.000000e+00> : vector<4x512xf32>
    %18 = tpu.matmul %17, %15, %cst_20 {dimension_numbers = #tpu.dot_dimension_numbers<[1], [0], [0], [1], [0, 0, 1, 1], [], []>} : vector<4x36xf32>, vector<36x512xf32>, vector<4x512xf32> -> vector<4x512xf32>
    %c1_21 = arith.constant 1 : index
    %c0_22 = arith.constant 0 : index
    %c0_23 = arith.constant 0 : index
    %19 = vector.load %arg7[%c1_21, %c0_22, %c0_23] : memref<9x1x512xf32, #tpu.memory_space<vmem>>, vector<1x1x512xf32>
    %20 = vector.shape_cast %19 : vector<1x1x512xf32> to vector<1x512xf32>
    %21 = vector.broadcast %20 : vector<1x512xf32> to vector<4x512xf32>
    %22 = arith.mulf %18, %21 : vector<4x512xf32>
    %23 = arith.addf %13, %22 : vector<4x512xf32>
    %c0_24 = arith.constant 0 : index
    %c0_25 = arith.constant 0 : index
    %c2 = arith.constant 2 : index
    %24 = vector.load %arg1[%c0_24, %c0_25, %c2] : memref<1x36x546xf32, #tpu.memory_space<vmem>>, vector<1x36x512xf32>
    %25 = vector.shape_cast %24 : vector<1x36x512xf32> to vector<36x512xf32>
    %c2_26 = arith.constant 2 : index
    %c0_27 = arith.constant 0 : index
    %c0_28 = arith.constant 0 : index
    %26 = vector.load %arg3[%c2_26, %c0_27, %c0_28] : memref<9x4x36xf32, #tpu.memory_space<vmem>>, vector<1x4x36xf32>
    %27 = vector.shape_cast %26 : vector<1x4x36xf32> to vector<4x36xf32>
    %cst_29 = arith.constant dense<0.000000e+00> : vector<4x512xf32>
    %28 = tpu.matmul %27, %25, %cst_29 {dimension_numbers = #tpu.dot_dimension_numbers<[1], [0], [0], [1], [0, 0, 1, 1], [], []>} : vector<4x36xf32>, vector<36x512xf32>, vector<4x512xf32> -> vector<4x512xf32>
    %c2_30 = arith.constant 2 : index
    %c0_31 = arith.constant 0 : index
    %c0_32 = arith.constant 0 : index
    %29 = vector.load %arg7[%c2_30, %c0_31, %c0_32] : memref<9x1x512xf32, #tpu.memory_space<vmem>>, vector<1x1x512xf32>
    %30 = vector.shape_cast %29 : vector<1x1x512xf32> to vector<1x512xf32>
    %31 = vector.broadcast %30 : vector<1x512xf32> to vector<4x512xf32>
    %32 = arith.mulf %28, %31 : vector<4x512xf32>
    %33 = arith.addf %23, %32 : vector<4x512xf32>
    %c0_33 = arith.constant 0 : index
    %c0_34 = arith.constant 0 : index
    %c16 = arith.constant 16 : index
    %34 = vector.load %arg1[%c0_33, %c0_34, %c16] : memref<1x36x546xf32, #tpu.memory_space<vmem>>, vector<1x36x512xf32>
    %35 = vector.shape_cast %34 : vector<1x36x512xf32> to vector<36x512xf32>
    %c3 = arith.constant 3 : index
    %c0_35 = arith.constant 0 : index
    %c0_36 = arith.constant 0 : index
    %36 = vector.load %arg3[%c3, %c0_35, %c0_36] : memref<9x4x36xf32, #tpu.memory_space<vmem>>, vector<1x4x36xf32>
    %37 = vector.shape_cast %36 : vector<1x4x36xf32> to vector<4x36xf32>
    %cst_37 = arith.constant dense<0.000000e+00> : vector<4x512xf32>
    %38 = tpu.matmul %37, %35, %cst_37 {dimension_numbers = #tpu.dot_dimension_numbers<[1], [0], [0], [1], [0, 0, 1, 1], [], []>} : vector<4x36xf32>, vector<36x512xf32>, vector<4x512xf32> -> vector<4x512xf32>
    %c3_38 = arith.constant 3 : index
    %c0_39 = arith.constant 0 : index
    %c0_40 = arith.constant 0 : index
    %39 = vector.load %arg7[%c3_38, %c0_39, %c0_40] : memref<9x1x512xf32, #tpu.memory_space<vmem>>, vector<1x1x512xf32>
    %40 = vector.shape_cast %39 : vector<1x1x512xf32> to vector<1x512xf32>
    %41 = vector.broadcast %40 : vector<1x512xf32> to vector<4x512xf32>
    %42 = arith.mulf %38, %41 : vector<4x512xf32>
    %43 = arith.addf %33, %42 : vector<4x512xf32>
    %c0_41 = arith.constant 0 : index
    %c0_42 = arith.constant 0 : index
    %c17 = arith.constant 17 : index
    %44 = vector.load %arg1[%c0_41, %c0_42, %c17] : memref<1x36x546xf32, #tpu.memory_space<vmem>>, vector<1x36x512xf32>
    %45 = vector.shape_cast %44 : vector<1x36x512xf32> to vector<36x512xf32>
    %c4 = arith.constant 4 : index
    %c0_43 = arith.constant 0 : index
    %c0_44 = arith.constant 0 : index
    %46 = vector.load %arg3[%c4, %c0_43, %c0_44] : memref<9x4x36xf32, #tpu.memory_space<vmem>>, vector<1x4x36xf32>
    %47 = vector.shape_cast %46 : vector<1x4x36xf32> to vector<4x36xf32>
    %cst_45 = arith.constant dense<0.000000e+00> : vector<4x512xf32>
    %48 = tpu.matmul %47, %45, %cst_45 {dimension_numbers = #tpu.dot_dimension_numbers<[1], [0], [0], [1], [0, 0, 1, 1], [], []>} : vector<4x36xf32>, vector<36x512xf32>, vector<4x512xf32> -> vector<4x512xf32>
    %c4_46 = arith.constant 4 : index
    %c0_47 = arith.constant 0 : index
    %c0_48 = arith.constant 0 : index
    %49 = vector.load %arg7[%c4_46, %c0_47, %c0_48] : memref<9x1x512xf32, #tpu.memory_space<vmem>>, vector<1x1x512xf32>
    %50 = vector.shape_cast %49 : vector<1x1x512xf32> to vector<1x512xf32>
    %51 = vector.broadcast %50 : vector<1x512xf32> to vector<4x512xf32>
    %52 = arith.mulf %48, %51 : vector<4x512xf32>
    %53 = arith.addf %43, %52 : vector<4x512xf32>
    %c0_49 = arith.constant 0 : index
    %c0_50 = arith.constant 0 : index
    %c18 = arith.constant 18 : index
    %54 = vector.load %arg1[%c0_49, %c0_50, %c18] : memref<1x36x546xf32, #tpu.memory_space<vmem>>, vector<1x36x512xf32>
    %55 = vector.shape_cast %54 : vector<1x36x512xf32> to vector<36x512xf32>
    %c5 = arith.constant 5 : index
    %c0_51 = arith.constant 0 : index
    %c0_52 = arith.constant 0 : index
    %56 = vector.load %arg3[%c5, %c0_51, %c0_52] : memref<9x4x36xf32, #tpu.memory_space<vmem>>, vector<1x4x36xf32>
    %57 = vector.shape_cast %56 : vector<1x4x36xf32> to vector<4x36xf32>
    %cst_53 = arith.constant dense<0.000000e+00> : vector<4x512xf32>
    %58 = tpu.matmul %57, %55, %cst_53 {dimension_numbers = #tpu.dot_dimension_numbers<[1], [0], [0], [1], [0, 0, 1, 1], [], []>} : vector<4x36xf32>, vector<36x512xf32>, vector<4x512xf32> -> vector<4x512xf32>
    %c5_54 = arith.constant 5 : index
    %c0_55 = arith.constant 0 : index
    %c0_56 = arith.constant 0 : index
    %59 = vector.load %arg7[%c5_54, %c0_55, %c0_56] : memref<9x1x512xf32, #tpu.memory_space<vmem>>, vector<1x1x512xf32>
    %60 = vector.shape_cast %59 : vector<1x1x512xf32> to vector<1x512xf32>
    %61 = vector.broadcast %60 : vector<1x512xf32> to vector<4x512xf32>
    %62 = arith.mulf %58, %61 : vector<4x512xf32>
    %63 = arith.addf %53, %62 : vector<4x512xf32>
    %c0_57 = arith.constant 0 : index
    %c0_58 = arith.constant 0 : index
    %c32 = arith.constant 32 : index
    %64 = vector.load %arg1[%c0_57, %c0_58, %c32] : memref<1x36x546xf32, #tpu.memory_space<vmem>>, vector<1x36x512xf32>
    %65 = vector.shape_cast %64 : vector<1x36x512xf32> to vector<36x512xf32>
    %c6 = arith.constant 6 : index
    %c0_59 = arith.constant 0 : index
    %c0_60 = arith.constant 0 : index
    %66 = vector.load %arg3[%c6, %c0_59, %c0_60] : memref<9x4x36xf32, #tpu.memory_space<vmem>>, vector<1x4x36xf32>
    %67 = vector.shape_cast %66 : vector<1x4x36xf32> to vector<4x36xf32>
    %cst_61 = arith.constant dense<0.000000e+00> : vector<4x512xf32>
    %68 = tpu.matmul %67, %65, %cst_61 {dimension_numbers = #tpu.dot_dimension_numbers<[1], [0], [0], [1], [0, 0, 1, 1], [], []>} : vector<4x36xf32>, vector<36x512xf32>, vector<4x512xf32> -> vector<4x512xf32>
    %c6_62 = arith.constant 6 : index
    %c0_63 = arith.constant 0 : index
    %c0_64 = arith.constant 0 : index
    %69 = vector.load %arg7[%c6_62, %c0_63, %c0_64] : memref<9x1x512xf32, #tpu.memory_space<vmem>>, vector<1x1x512xf32>
    %70 = vector.shape_cast %69 : vector<1x1x512xf32> to vector<1x512xf32>
    %71 = vector.broadcast %70 : vector<1x512xf32> to vector<4x512xf32>
    %72 = arith.mulf %68, %71 : vector<4x512xf32>
    %73 = arith.addf %63, %72 : vector<4x512xf32>
    %c0_65 = arith.constant 0 : index
    %c0_66 = arith.constant 0 : index
    %c33 = arith.constant 33 : index
    %74 = vector.load %arg1[%c0_65, %c0_66, %c33] : memref<1x36x546xf32, #tpu.memory_space<vmem>>, vector<1x36x512xf32>
    %75 = vector.shape_cast %74 : vector<1x36x512xf32> to vector<36x512xf32>
    %c7 = arith.constant 7 : index
    %c0_67 = arith.constant 0 : index
    %c0_68 = arith.constant 0 : index
    %76 = vector.load %arg3[%c7, %c0_67, %c0_68] : memref<9x4x36xf32, #tpu.memory_space<vmem>>, vector<1x4x36xf32>
    %77 = vector.shape_cast %76 : vector<1x4x36xf32> to vector<4x36xf32>
    %cst_69 = arith.constant dense<0.000000e+00> : vector<4x512xf32>
    %78 = tpu.matmul %77, %75, %cst_69 {dimension_numbers = #tpu.dot_dimension_numbers<[1], [0], [0], [1], [0, 0, 1, 1], [], []>} : vector<4x36xf32>, vector<36x512xf32>, vector<4x512xf32> -> vector<4x512xf32>
    %c7_70 = arith.constant 7 : index
    %c0_71 = arith.constant 0 : index
    %c0_72 = arith.constant 0 : index
    %79 = vector.load %arg7[%c7_70, %c0_71, %c0_72] : memref<9x1x512xf32, #tpu.memory_space<vmem>>, vector<1x1x512xf32>
    %80 = vector.shape_cast %79 : vector<1x1x512xf32> to vector<1x512xf32>
    %81 = vector.broadcast %80 : vector<1x512xf32> to vector<4x512xf32>
    %82 = arith.mulf %78, %81 : vector<4x512xf32>
    %83 = arith.addf %73, %82 : vector<4x512xf32>
    %c0_73 = arith.constant 0 : index
    %c0_74 = arith.constant 0 : index
    %c34 = arith.constant 34 : index
    %84 = vector.load %arg1[%c0_73, %c0_74, %c34] : memref<1x36x546xf32, #tpu.memory_space<vmem>>, vector<1x36x512xf32>
    %85 = vector.shape_cast %84 : vector<1x36x512xf32> to vector<36x512xf32>
    %c8 = arith.constant 8 : index
    %c0_75 = arith.constant 0 : index
    %c0_76 = arith.constant 0 : index
    %86 = vector.load %arg3[%c8, %c0_75, %c0_76] : memref<9x4x36xf32, #tpu.memory_space<vmem>>, vector<1x4x36xf32>
    %87 = vector.shape_cast %86 : vector<1x4x36xf32> to vector<4x36xf32>
    %cst_77 = arith.constant dense<0.000000e+00> : vector<4x512xf32>
    %88 = tpu.matmul %87, %85, %cst_77 {dimension_numbers = #tpu.dot_dimension_numbers<[1], [0], [0], [1], [0, 0, 1, 1], [], []>} : vector<4x36xf32>, vector<36x512xf32>, vector<4x512xf32> -> vector<4x512xf32>
    %c8_78 = arith.constant 8 : index
    %c0_79 = arith.constant 0 : index
    %c0_80 = arith.constant 0 : index
    %89 = vector.load %arg7[%c8_78, %c0_79, %c0_80] : memref<9x1x512xf32, #tpu.memory_space<vmem>>, vector<1x1x512xf32>
    %90 = vector.shape_cast %89 : vector<1x1x512xf32> to vector<1x512xf32>
    %91 = vector.broadcast %90 : vector<1x512xf32> to vector<4x512xf32>
    %92 = arith.mulf %88, %91 : vector<4x512xf32>
    %93 = arith.addf %83, %92 : vector<4x512xf32>
    %94 = vector.broadcast %0 : vector<4x1xf32> to vector<4x512xf32>
    %95 = arith.addf %93, %94 : vector<4x512xf32>
    %c0_81 = arith.constant 0 : index
    %c0_82 = arith.constant 0 : index
    %c0_83 = arith.constant 0 : index
    %96 = vector.load %arg2[%c0_81, %c0_82, %c0_83] : memref<1x1x512xf32, #tpu.memory_space<vmem>>, vector<1x1x512xf32>
    %97 = vector.shape_cast %96 : vector<1x1x512xf32> to vector<1x512xf32>
    %98 = vector.broadcast %97 : vector<1x512xf32> to vector<4x512xf32>
    %99 = arith.mulf %95, %98 : vector<4x512xf32>
    %c0_84 = arith.constant 0 : index
    %c0_85 = arith.constant 0 : index
    %c0_86 = arith.constant 0 : index
    %100 = vector.load %arg9[%c0_84, %c0_85, %c0_86] : memref<1x4x512xf32, #tpu.memory_space<vmem>>, vector<1x4x512xf32>
    %101 = vector.shape_cast %100 : vector<1x4x512xf32> to vector<4x512xf32>
    %102 = vector.shape_cast %99 : vector<4x512xf32> to vector<1x4x512xf32>
    tpu.vector_store %arg9[%c0_84, %c0_85, %c0_86], %102 {strides = array<i32>} : memref<1x4x512xf32, #tpu.memory_space<vmem>>, vector<1x4x512xf32>,
    %cst_87 = arith.constant 0.000000e+00 : f32
    %103 = vector.broadcast %cst_87 : f32 to vector<4x512xf32>
    %104 = arith.maximumf %99, %103 : vector<4x512xf32>
    %cst_88 = arith.constant dense<0.000000e+00> : vector<3x512xf32>
    %105 = tpu.matmul %1, %104, %cst_88 {dimension_numbers = #tpu.dot_dimension_numbers<[1], [0], [0], [1], [0, 0, 1, 1], [], []>} : vector<3x4xf32>, vector<4x512xf32>, vector<3x512xf32> -> vector<3x512xf32>
    %c0_89 = arith.constant 0 : index
    %c0_90 = arith.constant 0 : index
    %106 = vector.load %arg8[%c0_89, %c0_90] : memref<512x2xf32, #tpu.memory_space<vmem>>, vector<512x2xf32>
    %cst_91 = arith.constant dense<0.000000e+00> : vector<3x2xf32>
    %107 = tpu.matmul %105, %106, %cst_91 {dimension_numbers = #tpu.dot_dimension_numbers<[1], [0], [0], [1], [0, 0, 1, 1], [], []>} : vector<3x512xf32>, vector<512x2xf32>, vector<3x2xf32> -> vector<3x2xf32>
    %108 = vector.broadcast %2 : vector<3x1xf32> to vector<3x2xf32>
    %109 = arith.addf %107, %108 : vector<3x2xf32>
    %c0_92 = arith.constant 0 : index
    %c0_93 = arith.constant 0 : index
    %c0_94 = arith.constant 0 : index
    %110 = vector.load %arg10[%c0_92, %c0_93, %c0_94] : memref<1x3x2xf32, #tpu.memory_space<vmem>>, vector<1x3x2xf32>
    %111 = vector.shape_cast %110 : vector<1x3x2xf32> to vector<3x2xf32>
    %112 = vector.shape_cast %109 : vector<3x2xf32> to vector<1x3x2xf32>
    tpu.vector_store %arg10[%c0_92, %c0_93, %c0_94], %112 {strides = array<i32>} : memref<1x3x2xf32, #tpu.memory_space<vmem>>, vector<1x3x2xf32>,
    return
  }
  func.func @transform_0(%arg0: i32) -> (i32, i32, i32) {
    %c0_i32 = arith.constant 0 : i32
    %c0_i32_0 = arith.constant 0 : i32
    %c0_i32_1 = arith.constant 0 : i32
    return %arg0, %c0_i32, %c0_i32_0 : i32, i32, i32
  }
  func.func @transform_1(%arg0: i32) -> (i32, i32, i32) {
    %c0_i32 = arith.constant 0 : i32
    %c0_i32_0 = arith.constant 0 : i32
    %c0_i32_1 = arith.constant 0 : i32
    return %arg0, %c0_i32, %c0_i32_0 : i32, i32, i32
  }
  func.func @transform_2(%arg0: i32) -> (i32, i32, i32) {
    %c0_i32 = arith.constant 0 : i32
    %c0_i32_0 = arith.constant 0 : i32
    %c0_i32_1 = arith.constant 0 : i32
    %c0_i32_2 = arith.constant 0 : i32
    return %c0_i32, %c0_i32_0, %c0_i32_1 : i32, i32, i32
  }
  func.func @transform_3(%arg0: i32) -> (i32, i32) {
    %c0_i32 = arith.constant 0 : i32
    %c0_i32_0 = arith.constant 0 : i32
    %c0_i32_1 = arith.constant 0 : i32
    return %c0_i32, %c0_i32_0 : i32, i32
  }
  func.func @transform_4(%arg0: i32) -> (i32, i32) {
    %c0_i32 = arith.constant 0 : i32
    %c0_i32_0 = arith.constant 0 : i32
    %c0_i32_1 = arith.constant 0 : i32
    return %c0_i32, %c0_i32_0 : i32, i32
  }
  func.func @transform_5(%arg0: i32) -> (i32, i32) {
    %c0_i32 = arith.constant 0 : i32
    %c0_i32_0 = arith.constant 0 : i32
    %c0_i32_1 = arith.constant 0 : i32
    return %c0_i32, %c0_i32_0 : i32, i32
  }
  func.func @transform_6(%arg0: i32) -> (i32, i32, i32) {
    %c0_i32 = arith.constant 0 : i32
    %c0_i32_0 = arith.constant 0 : i32
    %c0_i32_1 = arith.constant 0 : i32
    %c0_i32_2 = arith.constant 0 : i32
    return %c0_i32, %c0_i32_0, %c0_i32_1 : i32, i32, i32
  }
  func.func @transform_7(%arg0: i32) -> (i32, i32) {
    %c0_i32 = arith.constant 0 : i32
    %c0_i32_0 = arith.constant 0 : i32
    %c0_i32_1 = arith.constant 0 : i32
    return %c0_i32, %c0_i32_0 : i32, i32
  }
  func.func @transform_8(%arg0: i32) -> (i32, i32, i32) {
    %c0_i32 = arith.constant 0 : i32
    %c0_i32_0 = arith.constant 0 : i32
    %c0_i32_1 = arith.constant 0 : i32
    return %arg0, %c0_i32, %c0_i32_0 : i32, i32, i32
  }
  func.func @transform_9(%arg0: i32) -> (i32, i32, i32) {
    %c0_i32 = arith.constant 0 : i32
    %c0_i32_0 = arith.constant 0 : i32
    %c0_i32_1 = arith.constant 0 : i32
    return %arg0, %c0_i32, %c0_i32_0 : i32, i32, i32
  }
}

</mosaic_0001>

<llo_original>
// kernel: iter_mask_forward.1
$region0: #{iter_mask_forward.1}
  #allocation0 [shape = 'u32[]', space=smem, size = 0x4, offset = 0x4, fixed_abs, tag = 'smem constant byte address 0x4 - core index']
  #allocation1 [shape = 'u32[144,128]{1,0:T(1,128)}', space=vmem, size = 0x12000, scoped, tag = 'internal scratch']
  %s0 = inlined_call_operand.vmem [shape: f32[1,36,546], index: 0, kind: input, shape index: {}]
  %s1 = inlined_call_operand.vmem [shape: f32[1,1,512], index: 1, kind: input, shape index: {}]
  %s2 = inlined_call_operand.vmem [shape: f32[9,4,36], index: 2, kind: input, shape index: {}]
  %s3 = inlined_call_operand.vmem [shape: f32[4,1], index: 3, kind: input, shape index: {}]
  %s4 = inlined_call_operand.vmem [shape: f32[3,4], index: 4, kind: input, shape index: {}]
  %s5 = inlined_call_operand.vmem [shape: f32[3,1], index: 5, kind: input, shape index: {}]
  %s6 = inlined_call_operand.vmem [shape: f32[9,1,512], index: 6, kind: input, shape index: {}]
  %s7 = inlined_call_operand.vmem [shape: f32[512,2], index: 7, kind: input, shape index: {}]
  %s8 = inlined_call_operand.vmem [shape: f32[1,4,512], index: 8, kind: output, shape index: {0}]
  %s9 = inlined_call_operand.vmem [shape: f32[1,3,2], index: 9, kind: output, shape index: {1}]
  %10 = xla_tuple %s8, %s9
  %s11 = sld [smem:[#allocation0]]
  $region50: #{iter_mask_forward.1} parent=0
    _
  %s13 = ssub.s32 1, %s11
  %s14 = scalar_select 0, %s13, %s11
  // Predicated region
  $region2: #{iter_mask_forward.1} parent=0 // pred_check
    _
  $region3: #{iter_mask_forward.1} parent=0 // pred_check_branch
    %16 = sbr.rel (0) target = $region5
  $region4: #{iter_mask_forward.1} parent=0 // pred_region
    _
  $region5: #{iter_mask_forward.1} parent=0 // pred_fallthru
    _
  // Predicated region
  $region6: #{iter_mask_forward.1} parent=0 // pred_check
    _
  $region7: #{iter_mask_forward.1} parent=0 // pred_check_branch
    %18 = sbr.rel (0) target = $region9
  $region8: #{iter_mask_forward.1} parent=0 // pred_region
    _
  $region9: #{iter_mask_forward.1} parent=0 // pred_fallthru
    _
  // Predicated region
  $region10: #{iter_mask_forward.1} parent=0 // pred_check
    _
  $region11: #{iter_mask_forward.1} parent=0 // pred_check_branch
    %20 = sbr.rel (0) target = $region13
  $region12: #{iter_mask_forward.1} parent=0 // pred_region
    _
  $region13: #{iter_mask_forward.1} parent=0 // pred_fallthru
    _
  // Predicated region
  $region14: #{iter_mask_forward.1} parent=0 // pred_check
    _
  $region15: #{iter_mask_forward.1} parent=0 // pred_check_branch
    %22 = sbr.rel (0) target = $region17
  $region16: #{iter_mask_forward.1} parent=0 // pred_region
    _
  $region17: #{iter_mask_forward.1} parent=0 // pred_fallthru
    _
  // Predicated region
  $region18: #{iter_mask_forward.1} parent=0 // pred_check
    _
  $region19: #{iter_mask_forward.1} parent=0 // pred_check_branch
    %24 = sbr.rel (0) target = $region21
  $region20: #{iter_mask_forward.1} parent=0 // pred_region
    _
  $region21: #{iter_mask_forward.1} parent=0 // pred_fallthru
    _
  // Predicated region
  $region22: #{iter_mask_forward.1} parent=0 // pred_check
    _
  $region23: #{iter_mask_forward.1} parent=0 // pred_check_branch
    %26 = sbr.rel (0) target = $region25
  $region24: #{iter_mask_forward.1} parent=0 // pred_region
    _
  $region25: #{iter_mask_forward.1} parent=0 // pred_fallthru
    _
  // Predicated region
  $region26: #{iter_mask_forward.1} parent=0 // pred_check
    _
  $region27: #{iter_mask_forward.1} parent=0 // pred_check_branch
    %28 = sbr.rel (0) target = $region29
  $region28: #{iter_mask_forward.1} parent=0 // pred_region
    _
  $region29: #{iter_mask_forward.1} parent=0 // pred_fallthru
    _
  // Predicated region
  $region30: #{iter_mask_forward.1} parent=0 // pred_check
    _
  $region31: #{iter_mask_forward.1} parent=0 // pred_check_branch
    %30 = sbr.rel (0) target = $region33
  $region32: #{iter_mask_forward.1} parent=0 // pred_region
    _
  $region33: #{iter_mask_forward.1} parent=0 // pred_fallthru
    _
  %v31 = vld [vmem:[%s3] sm:$0xf]
  %v32 = vld [vmem:[%s4] sm:$0x7]
  %v33 = vld [vmem:[%s5] sm:$0x7]
  %v34 = vld [vmem:[%s0] sm:$0xff]
  %v35 = vld [vmem:[%s0 + $0x8] sm:$0xff]
  %v36 = vld [vmem:[%s0 + $0x10] sm:$0xff]
  %v37 = vld [vmem:[%s0 + $0x18] sm:$0xff]
  %v38 = vld [vmem:[%s0 + $0x28] sm:$0xff]
  %v39 = vld [vmem:[%s0 + $0x30] sm:$0xff]
  %v40 = vld [vmem:[%s0 + $0x38] sm:$0xff]
  %v41 = vld [vmem:[%s0 + $0x40] sm:$0xff]
  %v42 = vld [vmem:[%s0 + $0x50] sm:$0xff]
  %v43 = vld [vmem:[%s0 + $0x58] sm:$0xff]
  %v44 = vld [vmem:[%s0 + $0x60] sm:$0xff]
  %v45 = vld [vmem:[%s0 + $0x68] sm:$0xff]
  %v46 = vld [vmem:[%s0 + $0x78] sm:$0xff]
  %v47 = vld [vmem:[%s0 + $0x80] sm:$0xff]
  %v48 = vld [vmem:[%s0 + $0x88] sm:$0xff]
  %v49 = vld [vmem:[%s0 + $0x90] sm:$0xff]
  %v50 = vld [vmem:[%s0 + $0xa0] sm:$0xf]
  %v51 = vld [vmem:[%s0 + $0xa8] sm:$0xf]
  %v52 = vld [vmem:[%s0 + $0xb0] sm:$0xf]
  %v53 = vld [vmem:[%s0 + $0xb8] sm:$0xf]
  %v54 = vld [vmem:[%s2] sm:$0xf]
  %vm55 = vcmask 293888
  %v57 = vsel %vm55, %v54, 0
  %vm59 = vcmask 1043456
  %v61 = vsel %vm59, %v50, 0
  %v64 = vsel %vm59, %v51, 0
  %v67 = vsel %vm59, %v52, 0
  %v70 = vsel %vm59, %v53, 0
  %72 = vmatprep.subr.mxu0 %v35
  %73 = vmatpush1.msra.mxu0 %v34
  %74 = vmatprep.subr.mxu0 %v39
  %75 = vmatpush1.msra.mxu0 %v38
  %76 = vmatprep.subr.mxu0 %v43
  %77 = vmatpush1.msra.mxu0 %v42
  %78 = vmatprep.subr.mxu0 %v47
  %79 = vmatpush1.msra.mxu0 %v46
  %80 = vmatprep.subr.mxu0 %v64
  %81 = vmatpush1.msra.mxu0 %v61
  %82 = vmatprep.subr.mxu0 0.0
  %83 = vmatpush1.msra.mxu0 0.0
  %84 = vmatprep.subr.mxu0 0.0
  %85 = vmatpush1.msra.mxu0 0.0
  %86 = vmatprep.subr.mxu0 0.0
  %87 = vmatpush1.msra.mxu0 0.0
  %88 = vmatprep.subr.mxu0 0.0
  %89 = vmatpush1.msra.mxu0 0.0
  %90 = vmatprep.subr.mxu0 0.0
  %91 = vmatpush1.msra.mxu0 0.0
  %92 = vmatprep.subr.mxu0 0.0
  %93 = vmatpush1.msra.mxu0 0.0
  %94 = vmatprep.subr.mxu0 0.0
  %95 = vmatpush1.msra.mxu0 0.0
  %96 = vmatprep.subr.mxu0 0.0
  %97 = vmatpush1.msra.mxu0 0.0
  %98 = vmatprep.subr.mxu0 0.0
  %99 = vmatpush1.msra.mxu0 0.0
  %100 = vmatprep.subr.mxu0 0.0
  %101 = vmatpush1.msra.mxu0 0.0
  %102 = vmatprep.subr.mxu0 0.0
  %103 = vmatpush1.msra.mxu0 0.0
  %104 = vmatprep.subr.mxu0 0.0
  %105 = vmatpush1.msra.mxu0 0.0
  %106 = vmatprep.subr.mxu0 0.0
  %107 = vmatpush1.msra.mxu0 0.0
  %108 = vmatprep.subr.mxu0 0.0
  %109 = vmatpush1.msra.mxu0 0.0
  %110 = vmatprep.subr.mxu0 0.0
  %111 = vmatpush1.msra.mxu0 0.0
  %112 = vmatprep.subr.mxu0 0.0
  %113 = vmatpush1.msra.mxu0 0.0
  %114 = vmatprep.subr.mxu0 0.0
  %115 = vmatpush1.msra.mxu0 0.0
  %116 = vmatprep.subr.mxu0 0.0
  %117 = vmatpush1.msra.mxu0 0.0
  %118 = vmatprep.subr.mxu0 0.0
  %119 = vmatpush1.msra.mxu0 0.0
  %120 = vmatprep.subr.mxu0 0.0
  %121 = vmatpush1.msra.mxu0 0.0
  %122 = vmatprep.subr.mxu0 0.0
  %123 = vmatpush1.msra.mxu0 0.0
  %124 = vmatprep.subr.mxu0 0.0
  %125 = vmatpush1.msra.mxu0 0.0
  %126 = vmatprep.subr.mxu0 0.0
  %127 = vmatpush1.msra.mxu0 0.0
  %128 = vmatprep.subr.mxu0 0.0
  %129 = vmatpush1.msra.mxu0 0.0
  %130 = vmatprep.subr.mxu0 0.0
  %131 = vmatpush1.msra.mxu0 0.0
  %132 = vmatprep.subr.mxu0 0.0
  %133 = vmatpush1.msra.mxu0 0.0
  %134 = vmatprep.subr.mxu0 0.0
  %135 = vmatpush1.msra.mxu0 0.0
  %136 = vmatprep.mubr.f32.mxu0 0.0
  %137 = vmatmul.mubr.f32.gmra.mrb[0].mxu0 %v57
  %v138 = vpop.f32.mrb[0].mxu0
  %v139 = vadd.f32 0.0, %v138
  %v140 = vpop.f32.mrb[0].mxu0
  %v141 = vadd.f32 0.0, %v140
  %142 = vdwg.mxu0
  %143 = vmatprep.subr.mxu0 %v37
  %144 = vmatpush1.msra.mxu0 %v36
  %145 = vmatprep.subr.mxu0 %v41
  %146 = vmatpush1.msra.mxu0 %v40
  %147 = vmatprep.subr.mxu0 %v45
  %148 = vmatpush1.msra.mxu0 %v44
  %149 = vmatprep.subr.mxu0 %v49
  %150 = vmatpush1.msra.mxu0 %v48
  %151 = vmatprep.subr.mxu0 %v70
  %152 = vmatpush1.msra.mxu0 %v67
  %153 = vmatprep.subr.mxu0 0.0
  %154 = vmatpush1.msra.mxu0 0.0
  %155 = vmatprep.subr.mxu0 0.0
  %156 = vmatpush1.msra.mxu0 0.0
  %157 = vmatprep.subr.mxu0 0.0
  %158 = vmatpush1.msra.mxu0 0.0
  %159 = vmatprep.subr.mxu0 0.0
  %160 = vmatpush1.msra.mxu0 0.0
  %161 = vmatprep.subr.mxu0 0.0
  %162 = vmatpush1.msra.mxu0 0.0
  %163 = vmatprep.subr.mxu0 0.0
  %164 = vmatpush1.msra.mxu0 0.0
  %165 = vmatprep.subr.mxu0 0.0
  %166 = vmatpush1.msra.mxu0 0.0
  %167 = vmatprep.subr.mxu0 0.0
  %168 = vmatpush1.msra.mxu0 0.0
  %169 = vmatprep.subr.mxu0 0.0
  %170 = vmatpush1.msra.mxu0 0.0
  %171 = vmatprep.subr.mxu0 0.0
  %172 = vmatpush1.msra.mxu0 0.0
  %173 = vmatprep.subr.mxu0 0.0
  %174 = vmatpush1.msra.mxu0 0.0
  %175 = vmatprep.subr.mxu0 0.0
  %176 = vmatpush1.msra.mxu0 0.0
  %177 = vmatprep.subr.mxu0 0.0
  %178 = vmatpush1.msra.mxu0 0.0
  %179 = vmatprep.subr.mxu0 0.0
  %180 = vmatpush1.msra.mxu0 0.0
  %181 = vmatprep.subr.mxu0 0.0
  %182 = vmatpush1.msra.mxu0 0.0
  %183 = vmatprep.subr.mxu0 0.0
  %184 = vmatpush1.msra.mxu0 0.0
  %185 = vmatprep.subr.mxu0 0.0
  %186 = vmatpush1.msra.mxu0 0.0
  %187 = vmatprep.subr.mxu0 0.0
  %188 = vmatpush1.msra.mxu0 0.0
  %189 = vmatprep.subr.mxu0 0.0
  %190 = vmatpush1.msra.mxu0 0.0
  %191 = vmatprep.subr.mxu0 0.0
  %192 = vmatpush1.msra.mxu0 0.0
  %193 = vmatprep.subr.mxu0 0.0
  %194 = vmatpush1.msra.mxu0 0.0
  %195 = vmatprep.subr.mxu0 0.0
  %196 = vmatpush1.msra.mxu0 0.0
  %197 = vmatprep.subr.mxu0 0.0
  %198 = vmatpush1.msra.mxu0 0.0
  %199 = vmatprep.subr.mxu0 0.0
  %200 = vmatpush1.msra.mxu0 0.0
  %201 = vmatprep.subr.mxu0 0.0
  %202 = vmatpush1.msra.mxu0 0.0
  %203 = vmatprep.subr.mxu0 0.0
  %204 = vmatpush1.msra.mxu0 0.0
  %205 = vmatprep.subr.mxu0 0.0
  %206 = vmatpush1.msra.mxu0 0.0
  %207 = vmatprep.mubr.f32.mxu0 0.0
  %208 = vmatmul.mubr.f32.gmra.mrb[0].mxu0 %v57
  %v209 = vpop.f32.mrb[0].mxu0
  %v210 = vadd.f32 0.0, %v209
  %v211 = vpop.f32.mrb[0].mxu0
  %v212 = vadd.f32 0.0, %v211
  %213 = vdwg.mxu0
  %v214 = vld [vmem:[%s6] sm:$0xf]
  %v216 = vlaneseq
  %v217 = vshrl.u32 %v216, 7
  %v218 = vsub.s32 0, %v217
  %v219 = vrot.slane %v214, %v218
  %v220 = vlaneseq
  %v221 = vshrl.u32 %v220, 7
  %v222 = vsub.s32 1, %v221
  %v223 = vrot.slane %v214, %v222
  %v224 = vlaneseq
  %v225 = vshrl.u32 %v224, 7
  %v226 = vsub.s32 2, %v225
  %v227 = vrot.slane %v214, %v226
  %v228 = vlaneseq
  %v229 = vshrl.u32 %v228, 7
  %v230 = vsub.s32 3, %v229
  %v231 = vrot.slane %v214, %v230
  %v236 = vmul.f32 %v139, %v219
  %v237 = vmul.f32 %v141, %v223
  %v238 = vmul.f32 %v210, %v227
  %v239 = vmul.f32 %v212, %v231
  %v240 = vadd.f32 %v236, 0.0
  %v241 = vadd.f32 %v237, 0.0
  %v242 = vadd.f32 %v238, 0.0
  %v243 = vadd.f32 %v239, 0.0
  %v244 = vld [vmem:[%s0] sm:$0xff]
  %v245 = vld [vmem:[%s0 + $0x8] sm:$0xff]
  %v246 = vld [vmem:[%s0 + $0x10] sm:$0xff]
  %v247 = vld [vmem:[%s0 + $0x18] sm:$0xff]
  %v248 = vld [vmem:[%s0 + $0x20] sm:$0xff]
  %v249 = vld [vmem:[%s0 + $0x28] sm:$0xff]
  %v250 = vld [vmem:[%s0 + $0x30] sm:$0xff]
  %v251 = vld [vmem:[%s0 + $0x38] sm:$0xff]
  %v252 = vld [vmem:[%s0 + $0x40] sm:$0xff]
  %v253 = vld [vmem:[%s0 + $0x48] sm:$0xff]
  %v254 = vld [vmem:[%s0 + $0x50] sm:$0xff]
  %v255 = vld [vmem:[%s0 + $0x58] sm:$0xff]
  %v256 = vld [vmem:[%s0 + $0x60] sm:$0xff]
  %v257 = vld [vmem:[%s0 + $0x68] sm:$0xff]
  %v258 = vld [vmem:[%s0 + $0x70] sm:$0xff]
  %v259 = vld [vmem:[%s0 + $0x78] sm:$0xff]
  %v260 = vld [vmem:[%s0 + $0x80] sm:$0xff]
  %v261 = vld [vmem:[%s0 + $0x88] sm:$0xff]
  %v262 = vld [vmem:[%s0 + $0x90] sm:$0xff]
  %v263 = vld [vmem:[%s0 + $0x98] sm:$0xff]
  %v264 = vld [vmem:[%s0 + $0xa0] sm:$0xf]
  %v265 = vld [vmem:[%s0 + $0xa8] sm:$0xf]
  %v266 = vld [vmem:[%s0 + $0xb0] sm:$0xf]
  %v267 = vld [vmem:[%s0 + $0xb8] sm:$0xf]
  %v268 = vld [vmem:[%s0 + $0xc0] sm:$0xf]
  %s269 = scalar_lea.vmem %s2, 4
  %v270 = vld [vmem:[%s269] sm:$0xf]
  %296 = vrot.lane.b32.xlu0 %v244, 127
  %v297 = vpop.permute.xlu0 %296
  %298 = vrot.lane.b32.xlu0 %v245, 127
  %v299 = vpop.permute.xlu0 %298
  %300 = vrot.lane.b32.xlu0 %v246, 127
  %v301 = vpop.permute.xlu0 %300
  %302 = vrot.lane.b32.xlu0 %v247, 127
  %v303 = vpop.permute.xlu0 %302
  %304 = vrot.lane.b32.xlu0 %v248, 127
  %v305 = vpop.permute.xlu0 %304
  %306 = vrot.lane.b32.xlu0 %v249, 127
  %v307 = vpop.permute.xlu0 %306
  %308 = vrot.lane.b32.xlu0 %v250, 127
  %v309 = vpop.permute.xlu0 %308
  %310 = vrot.lane.b32.xlu0 %v251, 127
  %v311 = vpop.permute.xlu0 %310
  %312 = vrot.lane.b32.xlu0 %v252, 127
  %v313 = vpop.permute.xlu0 %312
  %314 = vrot.lane.b32.xlu0 %v253, 127
  %v315 = vpop.permute.xlu0 %314
  %316 = vrot.lane.b32.xlu0 %v254, 127
  %v317 = vpop.permute.xlu0 %316
  %318 = vrot.lane.b32.xlu0 %v255, 127
  %v319 = vpop.permute.xlu0 %318
  %320 = vrot.lane.b32.xlu0 %v256, 127
  %v321 = vpop.permute.xlu0 %320
  %322 = vrot.lane.b32.xlu0 %v257, 127
  %v323 = vpop.permute.xlu0 %322
  %324 = vrot.lane.b32.xlu0 %v258, 127
  %v325 = vpop.permute.xlu0 %324
  %326 = vrot.lane.b32.xlu0 %v259, 127
  %v327 = vpop.permute.xlu0 %326
  %328 = vrot.lane.b32.xlu0 %v260, 127
  %v329 = vpop.permute.xlu0 %328
  %330 = vrot.lane.b32.xlu0 %v261, 127
  %v331 = vpop.permute.xlu0 %330
  %332 = vrot.lane.b32.xlu0 %v262, 127
  %v333 = vpop.permute.xlu0 %332
  %334 = vrot.lane.b32.xlu0 %v263, 127
  %v335 = vpop.permute.xlu0 %334
  %336 = vrot.lane.b32.xlu0 %v264, 127
  %v337 = vpop.permute.xlu0 %336
  %338 = vrot.lane.b32.xlu0 %v265, 127
  %v339 = vpop.permute.xlu0 %338
  %340 = vrot.lane.b32.xlu0 %v266, 127
  %v341 = vpop.permute.xlu0 %340
  %342 = vrot.lane.b32.xlu0 %v267, 127
  %v343 = vpop.permute.xlu0 %342
  %344 = vrot.lane.b32.xlu0 %v268, 127
  %v345 = vpop.permute.xlu0 %344
  %vm346 = vcmask 1039360
  %v347 = vsel %vm346, %v297, %v299
  %v348 = vsel %vm346, %v299, %v301
  %v349 = vsel %vm346, %v301, %v303
  %v350 = vsel %vm346, %v303, %v305
  %v351 = vsel %vm346, %v307, %v309
  %v352 = vsel %vm346, %v309, %v311
  %v353 = vsel %vm346, %v311, %v313
  %v354 = vsel %vm346, %v313, %v315
  %v355 = vsel %vm346, %v317, %v319
  %v356 = vsel %vm346, %v319, %v321
  %v357 = vsel %vm346, %v321, %v323
  %v358 = vsel %vm346, %v323, %v325
  %v359 = vsel %vm346, %v327, %v329
  %v360 = vsel %vm346, %v329, %v331
  %v361 = vsel %vm346, %v331, %v333
  %v362 = vsel %vm346, %v333, %v335
  %v363 = vsel %vm346, %v337, %v339
  %v364 = vsel %vm346, %v339, %v341
  %v365 = vsel %vm346, %v341, %v343
  %v366 = vsel %vm346, %v343, %v345
  %v384 = vsel %vm55, %v270, 0
  %v386 = vsel %vm59, %v363, 0
  %v388 = vsel %vm59, %v364, 0
  %v390 = vsel %vm59, %v365, 0
  %v392 = vsel %vm59, %v366, 0
  %394 = vmatprep.subr.mxu0 %v348
  %395 = vmatpush1.msra.mxu0 %v347
  %396 = vmatprep.subr.mxu0 %v352
  %397 = vmatpush1.msra.mxu0 %v351
  %398 = vmatprep.subr.mxu0 %v356
  %399 = vmatpush1.msra.mxu0 %v355
  %400 = vmatprep.subr.mxu0 %v360
  %401 = vmatpush1.msra.mxu0 %v359
  %402 = vmatprep.subr.mxu0 %v388
  %403 = vmatpush1.msra.mxu0 %v386
  %404 = vmatprep.subr.mxu0 0.0
  %405 = vmatpush1.msra.mxu0 0.0
  %406 = vmatprep.subr.mxu0 0.0
  %407 = vmatpush1.msra.mxu0 0.0
  %408 = vmatprep.subr.mxu0 0.0
  %409 = vmatpush1.msra.mxu0 0.0
  %410 = vmatprep.subr.mxu0 0.0
  %411 = vmatpush1.msra.mxu0 0.0
  %412 = vmatprep.subr.mxu0 0.0
  %413 = vmatpush1.msra.mxu0 0.0
  %414 = vmatprep.subr.mxu0 0.0
  %415 = vmatpush1.msra.mxu0 0.0
  %416 = vmatprep.subr.mxu0 0.0
  %417 = vmatpush1.msra.mxu0 0.0
  %418 = vmatprep.subr.mxu0 0.0
  %419 = vmatpush1.msra.mxu0 0.0
  %420 = vmatprep.subr.mxu0 0.0
  %421 = vmatpush1.msra.mxu0 0.0
  %422 = vmatprep.subr.mxu0 0.0
  %423 = vmatpush1.msra.mxu0 0.0
  %424 = vmatprep.subr.mxu0 0.0
  %425 = vmatpush1.msra.mxu0 0.0
  %426 = vmatprep.subr.mxu0 0.0
  %427 = vmatpush1.msra.mxu0 0.0
  %428 = vmatprep.subr.mxu0 0.0
  %429 = vmatpush1.msra.mxu0 0.0
  %430 = vmatprep.subr.mxu0 0.0
  %431 = vmatpush1.msra.mxu0 0.0
  %432 = vmatprep.subr.mxu0 0.0
  %433 = vmatpush1.msra.mxu0 0.0
  %434 = vmatprep.subr.mxu0 0.0
  %435 = vmatpush1.msra.mxu0 0.0
  %436 = vmatprep.subr.mxu0 0.0
  %437 = vmatpush1.msra.mxu0 0.0
  %438 = vmatprep.subr.mxu0 0.0
  %439 = vmatpush1.msra.mxu0 0.0
  %440 = vmatprep.subr.mxu0 0.0
  %441 = vmatpush1.msra.mxu0 0.0
  %442 = vmatprep.subr.mxu0 0.0
  %443 = vmatpush1.msra.mxu0 0.0
  %444 = vmatprep.subr.mxu0 0.0
  %445 = vmatpush1.msra.mxu0 0.0
  %446 = vmatprep.subr.mxu0 0.0
  %447 = vmatpush1.msra.mxu0 0.0
  %448 = vmatprep.subr.mxu0 0.0
  %449 = vmatpush1.msra.mxu0 0.0
  %450 = vmatprep.subr.mxu0 0.0
  %451 = vmatpush1.msra.mxu0 0.0
  %452 = vmatprep.subr.mxu0 0.0
  %453 = vmatpush1.msra.mxu0 0.0
  %454 = vmatprep.subr.mxu0 0.0
  %455 = vmatpush1.msra.mxu0 0.0
  %456 = vmatprep.subr.mxu0 0.0
  %457 = vmatpush1.msra.mxu0 0.0
  %458 = vmatprep.mubr.f32.mxu0 0.0
  %459 = vmatmul.mubr.f32.gmra.mrb[0].mxu0 %v384
  %v460 = vpop.f32.mrb[0].mxu0
  %v461 = vadd.f32 0.0, %v460
  %v462 = vpop.f32.mrb[0].mxu0
  %v463 = vadd.f32 0.0, %v462
  %464 = vdwg.mxu0
  %465 = vmatprep.subr.mxu0 %v350
  %466 = vmatpush1.msra.mxu0 %v349
  %467 = vmatprep.subr.mxu0 %v354
  %468 = vmatpush1.msra.mxu0 %v353
  %469 = vmatprep.subr.mxu0 %v358
  %470 = vmatpush1.msra.mxu0 %v357
  %471 = vmatprep.subr.mxu0 %v362
  %472 = vmatpush1.msra.mxu0 %v361
  %473 = vmatprep.subr.mxu0 %v392
  %474 = vmatpush1.msra.mxu0 %v390
  %475 = vmatprep.subr.mxu0 0.0
  %476 = vmatpush1.msra.mxu0 0.0
  %477 = vmatprep.subr.mxu0 0.0
  %478 = vmatpush1.msra.mxu0 0.0
  %479 = vmatprep.subr.mxu0 0.0
  %480 = vmatpush1.msra.mxu0 0.0
  %481 = vmatprep.subr.mxu0 0.0
  %482 = vmatpush1.msra.mxu0 0.0
  %483 = vmatprep.subr.mxu0 0.0
  %484 = vmatpush1.msra.mxu0 0.0
  %485 = vmatprep.subr.mxu0 0.0
  %486 = vmatpush1.msra.mxu0 0.0
  %487 = vmatprep.subr.mxu0 0.0
  %488 = vmatpush1.msra.mxu0 0.0
  %489 = vmatprep.subr.mxu0 0.0
  %490 = vmatpush1.msra.mxu0 0.0
  %491 = vmatprep.subr.mxu0 0.0
  %492 = vmatpush1.msra.mxu0 0.0
  %493 = vmatprep.subr.mxu0 0.0
  %494 = vmatpush1.msra.mxu0 0.0
  %495 = vmatprep.subr.mxu0 0.0
  %496 = vmatpush1.msra.mxu0 0.0
  %497 = vmatprep.subr.mxu0 0.0
  %498 = vmatpush1.msra.mxu0 0.0
  %499 = vmatprep.subr.mxu0 0.0
  %500 = vmatpush1.msra.mxu0 0.0
  %501 = vmatprep.subr.mxu0 0.0
  %502 = vmatpush1.msra.mxu0 0.0
  %503 = vmatprep.subr.mxu0 0.0
  %504 = vmatpush1.msra.mxu0 0.0
  %505 = vmatprep.subr.mxu0 0.0
  %506 = vmatpush1.msra.mxu0 0.0
  %507 = vmatprep.subr.mxu0 0.0
  %508 = vmatpush1.msra.mxu0 0.0
  %509 = vmatprep.subr.mxu0 0.0
  %510 = vmatpush1.msra.mxu0 0.0
  %511 = vmatprep.subr.mxu0 0.0
  %512 = vmatpush1.msra.mxu0 0.0
  %513 = vmatprep.subr.mxu0 0.0
  %514 = vmatpush1.msra.mxu0 0.0
  %515 = vmatprep.subr.mxu0 0.0
  %516 = vmatpush1.msra.mxu0 0.0
  %517 = vmatprep.subr.mxu0 0.0
  %518 = vmatpush1.msra.mxu0 0.0
  %519 = vmatprep.subr.mxu0 0.0
  %520 = vmatpush1.msra.mxu0 0.0
  %521 = vmatprep.subr.mxu0 0.0
  %522 = vmatpush1.msra.mxu0 0.0
  %523 = vmatprep.subr.mxu0 0.0
  %524 = vmatpush1.msra.mxu0 0.0
  %525 = vmatprep.subr.mxu0 0.0
  %526 = vmatpush1.msra.mxu0 0.0
  %527 = vmatprep.subr.mxu0 0.0
  %528 = vmatpush1.msra.mxu0 0.0
  %529 = vmatprep.mubr.f32.mxu0 0.0
  %530 = vmatmul.mubr.f32.gmra.mrb[0].mxu0 %v384
  %v531 = vpop.f32.mrb[0].mxu0
  %v532 = vadd.f32 0.0, %v531
  %v533 = vpop.f32.mrb[0].mxu0
  %v534 = vadd.f32 0.0, %v533
  %535 = vdwg.mxu0
  %s536 = scalar_lea.vmem %s6, 4
  %v537 = vld [vmem:[%s536] sm:$0xf]
  %v539 = vlaneseq
  %v540 = vshrl.u32 %v539, 7
  %v541 = vsub.s32 0, %v540
  %v542 = vrot.slane %v537, %v541
  %v543 = vlaneseq
  %v544 = vshrl.u32 %v543, 7
  %v545 = vsub.s32 1, %v544
  %v546 = vrot.slane %v537, %v545
  %v547 = vlaneseq
  %v548 = vshrl.u32 %v547, 7
  %v549 = vsub.s32 2, %v548
  %v550 = vrot.slane %v537, %v549
  %v551 = vlaneseq
  %v552 = vshrl.u32 %v551, 7
  %v553 = vsub.s32 3, %v552
  %v554 = vrot.slane %v537, %v553
  %v559 = vmul.f32 %v461, %v542
  %v560 = vmul.f32 %v463, %v546
  %v561 = vmul.f32 %v532, %v550
  %v562 = vmul.f32 %v534, %v554
  %v563 = vadd.f32 %v240, %v559
  %v564 = vadd.f32 %v241, %v560
  %v565 = vadd.f32 %v242, %v561
  %v566 = vadd.f32 %v243, %v562
  %s567 = scalar_lea.vmem %s2, 8
  %v568 = vld [vmem:[%s567] sm:$0xf]
  %569 = vrot.lane.b32.xlu0 %v244, 126
  %v570 = vpop.permute.xlu0 %569
  %571 = vrot.lane.b32.xlu0 %v245, 126
  %v572 = vpop.permute.xlu0 %571
  %573 = vrot.lane.b32.xlu0 %v246, 126
  %v574 = vpop.permute.xlu0 %573
  %575 = vrot.lane.b32.xlu0 %v247, 126
  %v576 = vpop.permute.xlu0 %575
  %577 = vrot.lane.b32.xlu0 %v248, 126
  %v578 = vpop.permute.xlu0 %577
  %579 = vrot.lane.b32.xlu0 %v249, 126
  %v580 = vpop.permute.xlu0 %579
  %581 = vrot.lane.b32.xlu0 %v250, 126
  %v582 = vpop.permute.xlu0 %581
  %583 = vrot.lane.b32.xlu0 %v251, 126
  %v584 = vpop.permute.xlu0 %583
  %585 = vrot.lane.b32.xlu0 %v252, 126
  %v586 = vpop.permute.xlu0 %585
  %587 = vrot.lane.b32.xlu0 %v253, 126
  %v588 = vpop.permute.xlu0 %587
  %589 = vrot.lane.b32.xlu0 %v254, 126
  %v590 = vpop.permute.xlu0 %589
  %591 = vrot.lane.b32.xlu0 %v255, 126
  %v592 = vpop.permute.xlu0 %591
  %593 = vrot.lane.b32.xlu0 %v256, 126
  %v594 = vpop.permute.xlu0 %593
  %595 = vrot.lane.b32.xlu0 %v257, 126
  %v596 = vpop.permute.xlu0 %595
  %597 = vrot.lane.b32.xlu0 %v258, 126
  %v598 = vpop.permute.xlu0 %597
  %599 = vrot.lane.b32.xlu0 %v259, 126
  %v600 = vpop.permute.xlu0 %599
  %601 = vrot.lane.b32.xlu0 %v260, 126
  %v602 = vpop.permute.xlu0 %601
  %603 = vrot.lane.b32.xlu0 %v261, 126
  %v604 = vpop.permute.xlu0 %603
  %605 = vrot.lane.b32.xlu0 %v262, 126
  %v606 = vpop.permute.xlu0 %605
  %607 = vrot.lane.b32.xlu0 %v263, 126
  %v608 = vpop.permute.xlu0 %607
  %609 = vrot.lane.b32.xlu0 %v264, 126
  %v610 = vpop.permute.xlu0 %609
  %611 = vrot.lane.b32.xlu0 %v265, 126
  %v612 = vpop.permute.xlu0 %611
  %613 = vrot.lane.b32.xlu0 %v266, 126
  %v614 = vpop.permute.xlu0 %613
  %615 = vrot.lane.b32.xlu0 %v267, 126
  %v616 = vpop.permute.xlu0 %615
  %617 = vrot.lane.b32.xlu0 %v268, 126
  %v618 = vpop.permute.xlu0 %617
  %vm619 = vcmask 1031168
  %v620 = vsel %vm619, %v570, %v572
  %v621 = vsel %vm619, %v572, %v574
  %v622 = vsel %vm619, %v574, %v576
  %v623 = vsel %vm619, %v576, %v578
  %v624 = vsel %vm619, %v580, %v582
  %v625 = vsel %vm619, %v582, %v584
  %v626 = vsel %vm619, %v584, %v586
  %v627 = vsel %vm619, %v586, %v588
  %v628 = vsel %vm619, %v590, %v592
  %v629 = vsel %vm619, %v592, %v594
  %v630 = vsel %vm619, %v594, %v596
  %v631 = vsel %vm619, %v596, %v598
  %v632 = vsel %vm619, %v600, %v602
  %v633 = vsel %vm619, %v602, %v604
  %v634 = vsel %vm619, %v604, %v606
  %v635 = vsel %vm619, %v606, %v608
  %v636 = vsel %vm619, %v610, %v612
  %v637 = vsel %vm619, %v612, %v614
  %v638 = vsel %vm619, %v614, %v616
  %v639 = vsel %vm619, %v616, %v618
  %v657 = vsel %vm55, %v568, 0
  %v659 = vsel %vm59, %v636, 0
  %v661 = vsel %vm59, %v637, 0
  %v663 = vsel %vm59, %v638, 0
  %v665 = vsel %vm59, %v639, 0
  %667 = vmatprep.subr.mxu0 %v621
  %668 = vmatpush1.msra.mxu0 %v620
  %669 = vmatprep.subr.mxu0 %v625
  %670 = vmatpush1.msra.mxu0 %v624
  %671 = vmatprep.subr.mxu0 %v629
  %672 = vmatpush1.msra.mxu0 %v628
  %673 = vmatprep.subr.mxu0 %v633
  %674 = vmatpush1.msra.mxu0 %v632
  %675 = vmatprep.subr.mxu0 %v661
  %676 = vmatpush1.msra.mxu0 %v659
  %677 = vmatprep.subr.mxu0 0.0
  %678 = vmatpush1.msra.mxu0 0.0
  %679 = vmatprep.subr.mxu0 0.0
  %680 = vmatpush1.msra.mxu0 0.0
  %681 = vmatprep.subr.mxu0 0.0
  %682 = vmatpush1.msra.mxu0 0.0
  %683 = vmatprep.subr.mxu0 0.0
  %684 = vmatpush1.msra.mxu0 0.0
  %685 = vmatprep.subr.mxu0 0.0
  %686 = vmatpush1.msra.mxu0 0.0
  %687 = vmatprep.subr.mxu0 0.0
  %688 = vmatpush1.msra.mxu0 0.0
  %689 = vmatprep.subr.mxu0 0.0
  %690 = vmatpush1.msra.mxu0 0.0
  %691 = vmatprep.subr.mxu0 0.0
  %692 = vmatpush1.msra.mxu0 0.0
  %693 = vmatprep.subr.mxu0 0.0
  %694 = vmatpush1.msra.mxu0 0.0
  %695 = vmatprep.subr.mxu0 0.0
  %696 = vmatpush1.msra.mxu0 0.0
  %697 = vmatprep.subr.mxu0 0.0
  %698 = vmatpush1.msra.mxu0 0.0
  %699 = vmatprep.subr.mxu0 0.0
  %700 = vmatpush1.msra.mxu0 0.0
  %701 = vmatprep.subr.mxu0 0.0
  %702 = vmatpush1.msra.mxu0 0.0
  %703 = vmatprep.subr.mxu0 0.0
  %704 = vmatpush1.msra.mxu0 0.0
  %705 = vmatprep.subr.mxu0 0.0
  %706 = vmatpush1.msra.mxu0 0.0
  %707 = vmatprep.subr.mxu0 0.0
  %708 = vmatpush1.msra.mxu0 0.0
  %709 = vmatprep.subr.mxu0 0.0
  %710 = vmatpush1.msra.mxu0 0.0
  %711 = vmatprep.subr.mxu0 0.0
  %712 = vmatpush1.msra.mxu0 0.0
  %713 = vmatprep.subr.mxu0 0.0
  %714 = vmatpush1.msra.mxu0 0.0
  %715 = vmatprep.subr.mxu0 0.0
  %716 = vmatpush1.msra.mxu0 0.0
  %717 = vmatprep.subr.mxu0 0.0
  %718 = vmatpush1.msra.mxu0 0.0
  %719 = vmatprep.subr.mxu0 0.0
  %720 = vmatpush1.msra.mxu0 0.0
  %721 = vmatprep.subr.mxu0 0.0
  %722 = vmatpush1.msra.mxu0 0.0
  %723 = vmatprep.subr.mxu0 0.0
  %724 = vmatpush1.msra.mxu0 0.0
  %725 = vmatprep.subr.mxu0 0.0
  %726 = vmatpush1.msra.mxu0 0.0
  %727 = vmatprep.subr.mxu0 0.0
  %728 = vmatpush1.msra.mxu0 0.0
  %729 = vmatprep.subr.mxu0 0.0
  %730 = vmatpush1.msra.mxu0 0.0
  %731 = vmatprep.mubr.f32.mxu0 0.0
  %732 = vmatmul.mubr.f32.gmra.mrb[0].mxu0 %v657
  %v733 = vpop.f32.mrb[0].mxu0
  %v734 = vadd.f32 0.0, %v733
  %v735 = vpop.f32.mrb[0].mxu0
  %v736 = vadd.f32 0.0, %v735
  %737 = vdwg.mxu0
  %738 = vmatprep.subr.mxu0 %v623
  %739 = vmatpush1.msra.mxu0 %v622
  %740 = vmatprep.subr.mxu0 %v627
  %741 = vmatpush1.msra.mxu0 %v626
  %742 = vmatprep.subr.mxu0 %v631
  %743 = vmatpush1.msra.mxu0 %v630
  %744 = vmatprep.subr.mxu0 %v635
  %745 = vmatpush1.msra.mxu0 %v634
  %746 = vmatprep.subr.mxu0 %v665
  %747 = vmatpush1.msra.mxu0 %v663
  %748 = vmatprep.subr.mxu0 0.0
  %749 = vmatpush1.msra.mxu0 0.0
  %750 = vmatprep.subr.mxu0 0.0
  %751 = vmatpush1.msra.mxu0 0.0
  %752 = vmatprep.subr.mxu0 0.0
  %753 = vmatpush1.msra.mxu0 0.0
  %754 = vmatprep.subr.mxu0 0.0
  %755 = vmatpush1.msra.mxu0 0.0
  %756 = vmatprep.subr.mxu0 0.0
  %757 = vmatpush1.msra.mxu0 0.0
  %758 = vmatprep.subr.mxu0 0.0
  %759 = vmatpush1.msra.mxu0 0.0
  %760 = vmatprep.subr.mxu0 0.0
  %761 = vmatpush1.msra.mxu0 0.0
  %762 = vmatprep.subr.mxu0 0.0
  %763 = vmatpush1.msra.mxu0 0.0
  %764 = vmatprep.subr.mxu0 0.0
  %765 = vmatpush1.msra.mxu0 0.0
  %766 = vmatprep.subr.mxu0 0.0
  %767 = vmatpush1.msra.mxu0 0.0
  %768 = vmatprep.subr.mxu0 0.0
  %769 = vmatpush1.msra.mxu0 0.0
  %770 = vmatprep.subr.mxu0 0.0
  %771 = vmatpush1.msra.mxu0 0.0
  %772 = vmatprep.subr.mxu0 0.0
  %773 = vmatpush1.msra.mxu0 0.0
  %774 = vmatprep.subr.mxu0 0.0
  %775 = vmatpush1.msra.mxu0 0.0
  %776 = vmatprep.subr.mxu0 0.0
  %777 = vmatpush1.msra.mxu0 0.0
  %778 = vmatprep.subr.mxu0 0.0
  %779 = vmatpush1.msra.mxu0 0.0
  %780 = vmatprep.subr.mxu0 0.0
  %781 = vmatpush1.msra.mxu0 0.0
  %782 = vmatprep.subr.mxu0 0.0
  %783 = vmatpush1.msra.mxu0 0.0
  %784 = vmatprep.subr.mxu0 0.0
  %785 = vmatpush1.msra.mxu0 0.0
  %786 = vmatprep.subr.mxu0 0.0
  %787 = vmatpush1.msra.mxu0 0.0
  %788 = vmatprep.subr.mxu0 0.0
  %789 = vmatpush1.msra.mxu0 0.0
  %790 = vmatprep.subr.mxu0 0.0
  %791 = vmatpush1.msra.mxu0 0.0
  %792 = vmatprep.subr.mxu0 0.0
  %793 = vmatpush1.msra.mxu0 0.0
  %794 = vmatprep.subr.mxu0 0.0
  %795 = vmatpush1.msra.mxu0 0.0
  %796 = vmatprep.subr.mxu0 0.0
  %797 = vmatpush1.msra.mxu0 0.0
  %798 = vmatprep.subr.mxu0 0.0
  %799 = vmatpush1.msra.mxu0 0.0
  %800 = vmatprep.subr.mxu0 0.0
  %801 = vmatpush1.msra.mxu0 0.0
  %802 = vmatprep.mubr.f32.mxu0 0.0
  %803 = vmatmul.mubr.f32.gmra.mrb[0].mxu0 %v657
  %v804 = vpop.f32.mrb[0].mxu0
  %v805 = vadd.f32 0.0, %v804
  %v806 = vpop.f32.mrb[0].mxu0
  %v807 = vadd.f32 0.0, %v806
  %808 = vdwg.mxu0
  %s809 = scalar_lea.vmem %s6, 8
  %v810 = vld [vmem:[%s809] sm:$0xf]
  %v812 = vlaneseq
  %v813 = vshrl.u32 %v812, 7
  %v814 = vsub.s32 0, %v813
  %v815 = vrot.slane %v810, %v814
  %v816 = vlaneseq
  %v817 = vshrl.u32 %v816, 7
  %v818 = vsub.s32 1, %v817
  %v819 = vrot.slane %v810, %v818
  %v820 = vlaneseq
  %v821 = vshrl.u32 %v820, 7
  %v822 = vsub.s32 2, %v821
  %v823 = vrot.slane %v810, %v822
  %v824 = vlaneseq
  %v825 = vshrl.u32 %v824, 7
  %v826 = vsub.s32 3, %v825
  %v827 = vrot.slane %v810, %v826
  %v832 = vmul.f32 %v734, %v815
  %v833 = vmul.f32 %v736, %v819
  %v834 = vmul.f32 %v805, %v823
  %v835 = vmul.f32 %v807, %v827
  %v836 = vadd.f32 %v563, %v832
  %v837 = vadd.f32 %v564, %v833
  %v838 = vadd.f32 %v565, %v834
  %v839 = vadd.f32 %v566, %v835
  %s840 = scalar_lea.vmem %s2, 12
  %v841 = vld [vmem:[%s840] sm:$0xf]
  %842 = vrot.lane.b32.xlu0 %v244, 112
  %v843 = vpop.permute.xlu0 %842
  %844 = vrot.lane.b32.xlu0 %v245, 112
  %v845 = vpop.permute.xlu0 %844
  %846 = vrot.lane.b32.xlu0 %v246, 112
  %v847 = vpop.permute.xlu0 %846
  %848 = vrot.lane.b32.xlu0 %v247, 112
  %v849 = vpop.permute.xlu0 %848
  %850 = vrot.lane.b32.xlu0 %v248, 112
  %v851 = vpop.permute.xlu0 %850
  %852 = vrot.lane.b32.xlu0 %v249, 112
  %v853 = vpop.permute.xlu0 %852
  %854 = vrot.lane.b32.xlu0 %v250, 112
  %v855 = vpop.permute.xlu0 %854
  %856 = vrot.lane.b32.xlu0 %v251, 112
  %v857 = vpop.permute.xlu0 %856
  %858 = vrot.lane.b32.xlu0 %v252, 112
  %v859 = vpop.permute.xlu0 %858
  %860 = vrot.lane.b32.xlu0 %v253, 112
  %v861 = vpop.permute.xlu0 %860
  %862 = vrot.lane.b32.xlu0 %v254, 112
  %v863 = vpop.permute.xlu0 %862
  %864 = vrot.lane.b32.xlu0 %v255, 112
  %v865 = vpop.permute.xlu0 %864
  %866 = vrot.lane.b32.xlu0 %v256, 112
  %v867 = vpop.permute.xlu0 %866
  %868 = vrot.lane.b32.xlu0 %v257, 112
  %v869 = vpop.permute.xlu0 %868
  %870 = vrot.lane.b32.xlu0 %v258, 112
  %v871 = vpop.permute.xlu0 %870
  %872 = vrot.lane.b32.xlu0 %v259, 112
  %v873 = vpop.permute.xlu0 %872
  %874 = vrot.lane.b32.xlu0 %v260, 112
  %v875 = vpop.permute.xlu0 %874
  %876 = vrot.lane.b32.xlu0 %v261, 112
  %v877 = vpop.permute.xlu0 %876
  %878 = vrot.lane.b32.xlu0 %v262, 112
  %v879 = vpop.permute.xlu0 %878
  %880 = vrot.lane.b32.xlu0 %v263, 112
  %v881 = vpop.permute.xlu0 %880
  %882 = vrot.lane.b32.xlu0 %v264, 112
  %v883 = vpop.permute.xlu0 %882
  %884 = vrot.lane.b32.xlu0 %v265, 112
  %v885 = vpop.permute.xlu0 %884
  %886 = vrot.lane.b32.xlu0 %v266, 112
  %v887 = vpop.permute.xlu0 %886
  %888 = vrot.lane.b32.xlu0 %v267, 112
  %v889 = vpop.permute.xlu0 %888
  %890 = vrot.lane.b32.xlu0 %v268, 112
  %v891 = vpop.permute.xlu0 %890
  %vm892 = vcmask 916480
  %v893 = vsel %vm892, %v843, %v845
  %v894 = vsel %vm892, %v845, %v847
  %v895 = vsel %vm892, %v847, %v849
  %v896 = vsel %vm892, %v849, %v851
  %v897 = vsel %vm892, %v853, %v855
  %v898 = vsel %vm892, %v855, %v857
  %v899 = vsel %vm892, %v857, %v859
  %v900 = vsel %vm892, %v859, %v861
  %v901 = vsel %vm892, %v863, %v865
  %v902 = vsel %vm892, %v865, %v867
  %v903 = vsel %vm892, %v867, %v869
  %v904 = vsel %vm892, %v869, %v871
  %v905 = vsel %vm892, %v873, %v875
  %v906 = vsel %vm892, %v875, %v877
  %v907 = vsel %vm892, %v877, %v879
  %v908 = vsel %vm892, %v879, %v881
  %v909 = vsel %vm892, %v883, %v885
  %v910 = vsel %vm892, %v885, %v887
  %v911 = vsel %vm892, %v887, %v889
  %v912 = vsel %vm892, %v889, %v891
  %v930 = vsel %vm55, %v841, 0
  %v932 = vsel %vm59, %v909, 0
  %v934 = vsel %vm59, %v910, 0
  %v936 = vsel %vm59, %v911, 0
  %v938 = vsel %vm59, %v912, 0
  %940 = vmatprep.subr.mxu0 %v894
  %941 = vmatpush1.msra.mxu0 %v893
  %942 = vmatprep.subr.mxu0 %v898
  %943 = vmatpush1.msra.mxu0 %v897
  %944 = vmatprep.subr.mxu0 %v902
  %945 = vmatpush1.msra.mxu0 %v901
  %946 = vmatprep.subr.mxu0 %v906
  %947 = vmatpush1.msra.mxu0 %v905
  %948 = vmatprep.subr.mxu0 %v934
  %949 = vmatpush1.msra.mxu0 %v932
  %950 = vmatprep.subr.mxu0 0.0
  %951 = vmatpush1.msra.mxu0 0.0
  %952 = vmatprep.subr.mxu0 0.0
  %953 = vmatpush1.msra.mxu0 0.0
  %954 = vmatprep.subr.mxu0 0.0
  %955 = vmatpush1.msra.mxu0 0.0
  %956 = vmatprep.subr.mxu0 0.0
  %957 = vmatpush1.msra.mxu0 0.0
  %958 = vmatprep.subr.mxu0 0.0
  %959 = vmatpush1.msra.mxu0 0.0
  %960 = vmatprep.subr.mxu0 0.0
  %961 = vmatpush1.msra.mxu0 0.0
  %962 = vmatprep.subr.mxu0 0.0
  %963 = vmatpush1.msra.mxu0 0.0
  %964 = vmatprep.subr.mxu0 0.0
  %965 = vmatpush1.msra.mxu0 0.0
  %966 = vmatprep.subr.mxu0 0.0
  %967 = vmatpush1.msra.mxu0 0.0
  %968 = vmatprep.subr.mxu0 0.0
  %969 = vmatpush1.msra.mxu0 0.0
  %970 = vmatprep.subr.mxu0 0.0
  %971 = vmatpush1.msra.mxu0 0.0
  %972 = vmatprep.subr.mxu0 0.0
  %973 = vmatpush1.msra.mxu0 0.0
  %974 = vmatprep.subr.mxu0 0.0
  %975 = vmatpush1.msra.mxu0 0.0
  %976 = vmatprep.subr.mxu0 0.0
  %977 = vmatpush1.msra.mxu0 0.0
  %978 = vmatprep.subr.mxu0 0.0
  %979 = vmatpush1.msra.mxu0 0.0
  %980 = vmatprep.subr.mxu0 0.0
  %981 = vmatpush1.msra.mxu0 0.0
  %982 = vmatprep.subr.mxu0 0.0
  %983 = vmatpush1.msra.mxu0 0.0
  %984 = vmatprep.subr.mxu0 0.0
  %985 = vmatpush1.msra.mxu0 0.0
  %986 = vmatprep.subr.mxu0 0.0
  %987 = vmatpush1.msra.mxu0 0.0
  %988 = vmatprep.subr.mxu0 0.0
  %989 = vmatpush1.msra.mxu0 0.0
  %990 = vmatprep.subr.mxu0 0.0
  %991 = vmatpush1.msra.mxu0 0.0
  %992 = vmatprep.subr.mxu0 0.0
  %993 = vmatpush1.msra.mxu0 0.0
  %994 = vmatprep.subr.mxu0 0.0
  %995 = vmatpush1.msra.mxu0 0.0
  %996 = vmatprep.subr.mxu0 0.0
  %997 = vmatpush1.msra.mxu0 0.0
  %998 = vmatprep.subr.mxu0 0.0
  %999 = vmatpush1.msra.mxu0 0.0
  %1000 = vmatprep.subr.mxu0 0.0
  %1001 = vmatpush1.msra.mxu0 0.0
  %1002 = vmatprep.subr.mxu0 0.0
  %1003 = vmatpush1.msra.mxu0 0.0
  %1004 = vmatprep.mubr.f32.mxu0 0.0
  %1005 = vmatmul.mubr.f32.gmra.mrb[0].mxu0 %v930
  %v1006 = vpop.f32.mrb[0].mxu0
  %v1007 = vadd.f32 0.0, %v1006
  %v1008 = vpop.f32.mrb[0].mxu0
  %v1009 = vadd.f32 0.0, %v1008
  %1010 = vdwg.mxu0
  %1011 = vmatprep.subr.mxu0 %v896
  %1012 = vmatpush1.msra.mxu0 %v895
  %1013 = vmatprep.subr.mxu0 %v900
  %1014 = vmatpush1.msra.mxu0 %v899
  %1015 = vmatprep.subr.mxu0 %v904
  %1016 = vmatpush1.msra.mxu0 %v903
  %1017 = vmatprep.subr.mxu0 %v908
  %1018 = vmatpush1.msra.mxu0 %v907
  %1019 = vmatprep.subr.mxu0 %v938
  %1020 = vmatpush1.msra.mxu0 %v936
  %1021 = vmatprep.subr.mxu0 0.0
  %1022 = vmatpush1.msra.mxu0 0.0
  %1023 = vmatprep.subr.mxu0 0.0
  %1024 = vmatpush1.msra.mxu0 0.0
  %1025 = vmatprep.subr.mxu0 0.0
  %1026 = vmatpush1.msra.mxu0 0.0
  %1027 = vmatprep.subr.mxu0 0.0
  %1028 = vmatpush1.msra.mxu0 0.0
  %1029 = vmatprep.subr.mxu0 0.0
  %1030 = vmatpush1.msra.mxu0 0.0
  %1031 = vmatprep.subr.mxu0 0.0
  %1032 = vmatpush1.msra.mxu0 0.0
  %1033 = vmatprep.subr.mxu0 0.0
  %1034 = vmatpush1.msra.mxu0 0.0
  %1035 = vmatprep.subr.mxu0 0.0
  %1036 = vmatpush1.msra.mxu0 0.0
  %1037 = vmatprep.subr.mxu0 0.0
  %1038 = vmatpush1.msra.mxu0 0.0
  %1039 = vmatprep.subr.mxu0 0.0
  %1040 = vmatpush1.msra.mxu0 0.0
  %1041 = vmatprep.subr.mxu0 0.0
  %1042 = vmatpush1.msra.mxu0 0.0
  %1043 = vmatprep.subr.mxu0 0.0
  %1044 = vmatpush1.msra.mxu0 0.0
  %1045 = vmatprep.subr.mxu0 0.0
  %1046 = vmatpush1.msra.mxu0 0.0
  %1047 = vmatprep.subr.mxu0 0.0
  %1048 = vmatpush1.msra.mxu0 0.0
  %1049 = vmatprep.subr.mxu0 0.0
  %1050 = vmatpush1.msra.mxu0 0.0
  %1051 = vmatprep.subr.mxu0 0.0
  %1052 = vmatpush1.msra.mxu0 0.0
  %1053 = vmatprep.subr.mxu0 0.0
  %1054 = vmatpush1.msra.mxu0 0.0
  %1055 = vmatprep.subr.mxu0 0.0
  %1056 = vmatpush1.msra.mxu0 0.0
  %1057 = vmatprep.subr.mxu0 0.0
  %1058 = vmatpush1.msra.mxu0 0.0
  %1059 = vmatprep.subr.mxu0 0.0
  %1060 = vmatpush1.msra.mxu0 0.0
  %1061 = vmatprep.subr.mxu0 0.0
  %1062 = vmatpush1.msra.mxu0 0.0
  %1063 = vmatprep.subr.mxu0 0.0
  %1064 = vmatpush1.msra.mxu0 0.0
  %1065 = vmatprep.subr.mxu0 0.0
  %1066 = vmatpush1.msra.mxu0 0.0
  %1067 = vmatprep.subr.mxu0 0.0
  %1068 = vmatpush1.msra.mxu0 0.0
  %1069 = vmatprep.subr.mxu0 0.0
  %1070 = vmatpush1.msra.mxu0 0.0
  %1071 = vmatprep.subr.mxu0 0.0
  %1072 = vmatpush1.msra.mxu0 0.0
  %1073 = vmatprep.subr.mxu0 0.0
  %1074 = vmatpush1.msra.mxu0 0.0
  %1075 = vmatprep.mubr.f32.mxu0 0.0
  %1076 = vmatmul.mubr.f32.gmra.mrb[0].mxu0 %v930
  %v1077 = vpop.f32.mrb[0].mxu0
  %v1078 = vadd.f32 0.0, %v1077
  %v1079 = vpop.f32.mrb[0].mxu0
  %v1080 = vadd.f32 0.0, %v1079
  %1081 = vdwg.mxu0
  %s1082 = scalar_lea.vmem %s6, 12
  %v1083 = vld [vmem:[%s1082] sm:$0xf]
  %v1085 = vlaneseq
  %v1086 = vshrl.u32 %v1085, 7
  %v1087 = vsub.s32 0, %v1086
  %v1088 = vrot.slane %v1083, %v1087
  %v1089 = vlaneseq
  %v1090 = vshrl.u32 %v1089, 7
  %v1091 = vsub.s32 1, %v1090
  %v1092 = vrot.slane %v1083, %v1091
  %v1093 = vlaneseq
  %v1094 = vshrl.u32 %v1093, 7
  %v1095 = vsub.s32 2, %v1094
  %v1096 = vrot.slane %v1083, %v1095
  %v1097 = vlaneseq
  %v1098 = vshrl.u32 %v1097, 7
  %v1099 = vsub.s32 3, %v1098
  %v1100 = vrot.slane %v1083, %v1099
  %v1105 = vmul.f32 %v1007, %v1088
  %v1106 = vmul.f32 %v1009, %v1092
  %v1107 = vmul.f32 %v1078, %v1096
  %v1108 = vmul.f32 %v1080, %v1100
  %v1109 = vadd.f32 %v836, %v1105
  %v1110 = vadd.f32 %v837, %v1106
  %v1111 = vadd.f32 %v838, %v1107
  %v1112 = vadd.f32 %v839, %v1108
  %s1113 = scalar_lea.vmem %s2, 16
  %v1114 = vld [vmem:[%s1113] sm:$0xf]
  %1115 = vrot.lane.b32.xlu0 %v244, 111
  %v1116 = vpop.permute.xlu0 %1115
  %1117 = vrot.lane.b32.xlu0 %v245, 111
  %v1118 = vpop.permute.xlu0 %1117
  %1119 = vrot.lane.b32.xlu0 %v246, 111
  %v1120 = vpop.permute.xlu0 %1119
  %1121 = vrot.lane.b32.xlu0 %v247, 111
  %v1122 = vpop.permute.xlu0 %1121
  %1123 = vrot.lane.b32.xlu0 %v248, 111
  %v1124 = vpop.permute.xlu0 %1123
  %1125 = vrot.lane.b32.xlu0 %v249, 111
  %v1126 = vpop.permute.xlu0 %1125
  %1127 = vrot.lane.b32.xlu0 %v250, 111
  %v1128 = vpop.permute.xlu0 %1127
  %1129 = vrot.lane.b32.xlu0 %v251, 111
  %v1130 = vpop.permute.xlu0 %1129
  %1131 = vrot.lane.b32.xlu0 %v252, 111
  %v1132 = vpop.permute.xlu0 %1131
  %1133 = vrot.lane.b32.xlu0 %v253, 111
  %v1134 = vpop.permute.xlu0 %1133
  %1135 = vrot.lane.b32.xlu0 %v254, 111
  %v1136 = vpop.permute.xlu0 %1135
  %1137 = vrot.lane.b32.xlu0 %v255, 111
  %v1138 = vpop.permute.xlu0 %1137
  %1139 = vrot.lane.b32.xlu0 %v256, 111
  %v1140 = vpop.permute.xlu0 %1139
  %1141 = vrot.lane.b32.xlu0 %v257, 111
  %v1142 = vpop.permute.xlu0 %1141
  %1143 = vrot.lane.b32.xlu0 %v258, 111
  %v1144 = vpop.permute.xlu0 %1143
  %1145 = vrot.lane.b32.xlu0 %v259, 111
  %v1146 = vpop.permute.xlu0 %1145
  %1147 = vrot.lane.b32.xlu0 %v260, 111
  %v1148 = vpop.permute.xlu0 %1147
  %1149 = vrot.lane.b32.xlu0 %v261, 111
  %v1150 = vpop.permute.xlu0 %1149
  %1151 = vrot.lane.b32.xlu0 %v262, 111
  %v1152 = vpop.permute.xlu0 %1151
  %1153 = vrot.lane.b32.xlu0 %v263, 111
  %v1154 = vpop.permute.xlu0 %1153
  %1155 = vrot.lane.b32.xlu0 %v264, 111
  %v1156 = vpop.permute.xlu0 %1155
  %1157 = vrot.lane.b32.xlu0 %v265, 111
  %v1158 = vpop.permute.xlu0 %1157
  %1159 = vrot.lane.b32.xlu0 %v266, 111
  %v1160 = vpop.permute.xlu0 %1159
  %1161 = vrot.lane.b32.xlu0 %v267, 111
  %v1162 = vpop.permute.xlu0 %1161
  %1163 = vrot.lane.b32.xlu0 %v268, 111
  %v1164 = vpop.permute.xlu0 %1163
  %vm1165 = vcmask 908288
  %v1166 = vsel %vm1165, %v1116, %v1118
  %v1167 = vsel %vm1165, %v1118, %v1120
  %v1168 = vsel %vm1165, %v1120, %v1122
  %v1169 = vsel %vm1165, %v1122, %v1124
  %v1170 = vsel %vm1165, %v1126, %v1128
  %v1171 = vsel %vm1165, %v1128, %v1130
  %v1172 = vsel %vm1165, %v1130, %v1132
  %v1173 = vsel %vm1165, %v1132, %v1134
  %v1174 = vsel %vm1165, %v1136, %v1138
  %v1175 = vsel %vm1165, %v1138, %v1140
  %v1176 = vsel %vm1165, %v1140, %v1142
  %v1177 = vsel %vm1165, %v1142, %v1144
  %v1178 = vsel %vm1165, %v1146, %v1148
  %v1179 = vsel %vm1165, %v1148, %v1150
  %v1180 = vsel %vm1165, %v1150, %v1152
  %v1181 = vsel %vm1165, %v1152, %v1154
  %v1182 = vsel %vm1165, %v1156, %v1158
  %v1183 = vsel %vm1165, %v1158, %v1160
  %v1184 = vsel %vm1165, %v1160, %v1162
  %v1185 = vsel %vm1165, %v1162, %v1164
  %v1203 = vsel %vm55, %v1114, 0
  %v1205 = vsel %vm59, %v1182, 0
  %v1207 = vsel %vm59, %v1183, 0
  %v1209 = vsel %vm59, %v1184, 0
  %v1211 = vsel %vm59, %v1185, 0
  %1213 = vmatprep.subr.mxu0 %v1167
  %1214 = vmatpush1.msra.mxu0 %v1166
  %1215 = vmatprep.subr.mxu0 %v1171
  %1216 = vmatpush1.msra.mxu0 %v1170
  %1217 = vmatprep.subr.mxu0 %v1175
  %1218 = vmatpush1.msra.mxu0 %v1174
  %1219 = vmatprep.subr.mxu0 %v1179
  %1220 = vmatpush1.msra.mxu0 %v1178
  %1221 = vmatprep.subr.mxu0 %v1207
  %1222 = vmatpush1.msra.mxu0 %v1205
  %1223 = vmatprep.subr.mxu0 0.0
  %1224 = vmatpush1.msra.mxu0 0.0
  %1225 = vmatprep.subr.mxu0 0.0
  %1226 = vmatpush1.msra.mxu0 0.0
  %1227 = vmatprep.subr.mxu0 0.0
  %1228 = vmatpush1.msra.mxu0 0.0
  %1229 = vmatprep.subr.mxu0 0.0
  %1230 = vmatpush1.msra.mxu0 0.0
  %1231 = vmatprep.subr.mxu0 0.0
  %1232 = vmatpush1.msra.mxu0 0.0
  %1233 = vmatprep.subr.mxu0 0.0
  %1234 = vmatpush1.msra.mxu0 0.0
  %1235 = vmatprep.subr.mxu0 0.0
  %1236 = vmatpush1.msra.mxu0 0.0
  %1237 = vmatprep.subr.mxu0 0.0
  %1238 = vmatpush1.msra.mxu0 0.0
  %1239 = vmatprep.subr.mxu0 0.0
  %1240 = vmatpush1.msra.mxu0 0.0
  %1241 = vmatprep.subr.mxu0 0.0
  %1242 = vmatpush1.msra.mxu0 0.0
  %1243 = vmatprep.subr.mxu0 0.0
  %1244 = vmatpush1.msra.mxu0 0.0
  %1245 = vmatprep.subr.mxu0 0.0
  %1246 = vmatpush1.msra.mxu0 0.0
  %1247 = vmatprep.subr.mxu0 0.0
  %1248 = vmatpush1.msra.mxu0 0.0
  %1249 = vmatprep.subr.mxu0 0.0
  %1250 = vmatpush1.msra.mxu0 0.0
  %1251 = vmatprep.subr.mxu0 0.0
  %1252 = vmatpush1.msra.mxu0 0.0
  %1253 = vmatprep.subr.mxu0 0.0
  %1254 = vmatpush1.msra.mxu0 0.0
  %1255 = vmatprep.subr.mxu0 0.0
  %1256 = vmatpush1.msra.mxu0 0.0
  %1257 = vmatprep.subr.mxu0 0.0
  %1258 = vmatpush1.msra.mxu0 0.0
  %1259 = vmatprep.subr.mxu0 0.0
  %1260 = vmatpush1.msra.mxu0 0.0
  %1261 = vmatprep.subr.mxu0 0.0
  %1262 = vmatpush1.msra.mxu0 0.0
  %1263 = vmatprep.subr.mxu0 0.0
  %1264 = vmatpush1.msra.mxu0 0.0
  %1265 = vmatprep.subr.mxu0 0.0
  %1266 = vmatpush1.msra.mxu0 0.0
  %1267 = vmatprep.subr.mxu0 0.0
  %1268 = vmatpush1.msra.mxu0 0.0
  %1269 = vmatprep.subr.mxu0 0.0
  %1270 = vmatpush1.msra.mxu0 0.0
  %1271 = vmatprep.subr.mxu0 0.0
  %1272 = vmatpush1.msra.mxu0 0.0
  %1273 = vmatprep.subr.mxu0 0.0
  %1274 = vmatpush1.msra.mxu0 0.0
  %1275 = vmatprep.subr.mxu0 0.0
  %1276 = vmatpush1.msra.mxu0 0.0
  %1277 = vmatprep.mubr.f32.mxu0 0.0
  %1278 = vmatmul.mubr.f32.gmra.mrb[0].mxu0 %v1203
  %v1279 = vpop.f32.mrb[0].mxu0
  %v1280 = vadd.f32 0.0, %v1279
  %v1281 = vpop.f32.mrb[0].mxu0
  %v1282 = vadd.f32 0.0, %v1281
  %1283 = vdwg.mxu0
  %1284 = vmatprep.subr.mxu0 %v1169
  %1285 = vmatpush1.msra.mxu0 %v1168
  %1286 = vmatprep.subr.mxu0 %v1173
  %1287 = vmatpush1.msra.mxu0 %v1172
  %1288 = vmatprep.subr.mxu0 %v1177
  %1289 = vmatpush1.msra.mxu0 %v1176
  %1290 = vmatprep.subr.mxu0 %v1181
  %1291 = vmatpush1.msra.mxu0 %v1180
  %1292 = vmatprep.subr.mxu0 %v1211
  %1293 = vmatpush1.msra.mxu0 %v1209
  %1294 = vmatprep.subr.mxu0 0.0
  %1295 = vmatpush1.msra.mxu0 0.0
  %1296 = vmatprep.subr.mxu0 0.0
  %1297 = vmatpush1.msra.mxu0 0.0
  %1298 = vmatprep.subr.mxu0 0.0
  %1299 = vmatpush1.msra.mxu0 0.0
  %1300 = vmatprep.subr.mxu0 0.0
  %1301 = vmatpush1.msra.mxu0 0.0
  %1302 = vmatprep.subr.mxu0 0.0
  %1303 = vmatpush1.msra.mxu0 0.0
  %1304 = vmatprep.subr.mxu0 0.0
  %1305 = vmatpush1.msra.mxu0 0.0
  %1306 = vmatprep.subr.mxu0 0.0
  %1307 = vmatpush1.msra.mxu0 0.0
  %1308 = vmatprep.subr.mxu0 0.0
  %1309 = vmatpush1.msra.mxu0 0.0
  %1310 = vmatprep.subr.mxu0 0.0
  %1311 = vmatpush1.msra.mxu0 0.0
  %1312 = vmatprep.subr.mxu0 0.0
  %1313 = vmatpush1.msra.mxu0 0.0
  %1314 = vmatprep.subr.mxu0 0.0
  %1315 = vmatpush1.msra.mxu0 0.0
  %1316 = vmatprep.subr.mxu0 0.0
  %1317 = vmatpush1.msra.mxu0 0.0
  %1318 = vmatprep.subr.mxu0 0.0
  %1319 = vmatpush1.msra.mxu0 0.0
  %1320 = vmatprep.subr.mxu0 0.0
  %1321 = vmatpush1.msra.mxu0 0.0
  %1322 = vmatprep.subr.mxu0 0.0
  %1323 = vmatpush1.msra.mxu0 0.0
  %1324 = vmatprep.subr.mxu0 0.0
  %1325 = vmatpush1.msra.mxu0 0.0
  %1326 = vmatprep.subr.mxu0 0.0
  %1327 = vmatpush1.msra.mxu0 0.0
  %1328 = vmatprep.subr.mxu0 0.0
  %1329 = vmatpush1.msra.mxu0 0.0
  %1330 = vmatprep.subr.mxu0 0.0
  %1331 = vmatpush1.msra.mxu0 0.0
  %1332 = vmatprep.subr.mxu0 0.0
  %1333 = vmatpush1.msra.mxu0 0.0
  %1334 = vmatprep.subr.mxu0 0.0
  %1335 = vmatpush1.msra.mxu0 0.0
  %1336 = vmatprep.subr.mxu0 0.0
  %1337 = vmatpush1.msra.mxu0 0.0
  %1338 = vmatprep.subr.mxu0 0.0
  %1339 = vmatpush1.msra.mxu0 0.0
  %1340 = vmatprep.subr.mxu0 0.0
  %1341 = vmatpush1.msra.mxu0 0.0
  %1342 = vmatprep.subr.mxu0 0.0
  %1343 = vmatpush1.msra.mxu0 0.0
  %1344 = vmatprep.subr.mxu0 0.0
  %1345 = vmatpush1.msra.mxu0 0.0
  %1346 = vmatprep.subr.mxu0 0.0
  %1347 = vmatpush1.msra.mxu0 0.0
  %1348 = vmatprep.mubr.f32.mxu0 0.0
  %1349 = vmatmul.mubr.f32.gmra.mrb[0].mxu0 %v1203
  %v1350 = vpop.f32.mrb[0].mxu0
  %v1351 = vadd.f32 0.0, %v1350
  %v1352 = vpop.f32.mrb[0].mxu0
  %v1353 = vadd.f32 0.0, %v1352
  %1354 = vdwg.mxu0
  %s1355 = scalar_lea.vmem %s6, 16
  %v1356 = vld [vmem:[%s1355] sm:$0xf]
  %v1358 = vlaneseq
  %v1359 = vshrl.u32 %v1358, 7
  %v1360 = vsub.s32 0, %v1359
  %v1361 = vrot.slane %v1356, %v1360
  %v1362 = vlaneseq
  %v1363 = vshrl.u32 %v1362, 7
  %v1364 = vsub.s32 1, %v1363
  %v1365 = vrot.slane %v1356, %v1364
  %v1366 = vlaneseq
  %v1367 = vshrl.u32 %v1366, 7
  %v1368 = vsub.s32 2, %v1367
  %v1369 = vrot.slane %v1356, %v1368
  %v1370 = vlaneseq
  %v1371 = vshrl.u32 %v1370, 7
  %v1372 = vsub.s32 3, %v1371
  %v1373 = vrot.slane %v1356, %v1372
  %v1378 = vmul.f32 %v1280, %v1361
  %v1379 = vmul.f32 %v1282, %v1365
  %v1380 = vmul.f32 %v1351, %v1369
  %v1381 = vmul.f32 %v1353, %v1373
  %v1382 = vadd.f32 %v1109, %v1378
  %v1383 = vadd.f32 %v1110, %v1379
  %v1384 = vadd.f32 %v1111, %v1380
  %v1385 = vadd.f32 %v1112, %v1381
  %s1386 = scalar_lea.vmem %s2, 20
  %v1387 = vld [vmem:[%s1386] sm:$0xf]
  %1388 = vrot.lane.b32.xlu0 %v244, 110
  %v1389 = vpop.permute.xlu0 %1388
  %1390 = vrot.lane.b32.xlu0 %v245, 110
  %v1391 = vpop.permute.xlu0 %1390
  %1392 = vrot.lane.b32.xlu0 %v246, 110
  %v1393 = vpop.permute.xlu0 %1392
  %1394 = vrot.lane.b32.xlu0 %v247, 110
  %v1395 = vpop.permute.xlu0 %1394
  %1396 = vrot.lane.b32.xlu0 %v248, 110
  %v1397 = vpop.permute.xlu0 %1396
  %1398 = vrot.lane.b32.xlu0 %v249, 110
  %v1399 = vpop.permute.xlu0 %1398
  %1400 = vrot.lane.b32.xlu0 %v250, 110
  %v1401 = vpop.permute.xlu0 %1400
  %1402 = vrot.lane.b32.xlu0 %v251, 110
  %v1403 = vpop.permute.xlu0 %1402
  %1404 = vrot.lane.b32.xlu0 %v252, 110
  %v1405 = vpop.permute.xlu0 %1404
  %1406 = vrot.lane.b32.xlu0 %v253, 110
  %v1407 = vpop.permute.xlu0 %1406
  %1408 = vrot.lane.b32.xlu0 %v254, 110
  %v1409 = vpop.permute.xlu0 %1408
  %1410 = vrot.lane.b32.xlu0 %v255, 110
  %v1411 = vpop.permute.xlu0 %1410
  %1412 = vrot.lane.b32.xlu0 %v256, 110
  %v1413 = vpop.permute.xlu0 %1412
  %1414 = vrot.lane.b32.xlu0 %v257, 110
  %v1415 = vpop.permute.xlu0 %1414
  %1416 = vrot.lane.b32.xlu0 %v258, 110
  %v1417 = vpop.permute.xlu0 %1416
  %1418 = vrot.lane.b32.xlu0 %v259, 110
  %v1419 = vpop.permute.xlu0 %1418
  %1420 = vrot.lane.b32.xlu0 %v260, 110
  %v1421 = vpop.permute.xlu0 %1420
  %1422 = vrot.lane.b32.xlu0 %v261, 110
  %v1423 = vpop.permute.xlu0 %1422
  %1424 = vrot.lane.b32.xlu0 %v262, 110
  %v1425 = vpop.permute.xlu0 %1424
  %1426 = vrot.lane.b32.xlu0 %v263, 110
  %v1427 = vpop.permute.xlu0 %1426
  %1428 = vrot.lane.b32.xlu0 %v264, 110
  %v1429 = vpop.permute.xlu0 %1428
  %1430 = vrot.lane.b32.xlu0 %v265, 110
  %v1431 = vpop.permute.xlu0 %1430
  %1432 = vrot.lane.b32.xlu0 %v266, 110
  %v1433 = vpop.permute.xlu0 %1432
  %1434 = vrot.lane.b32.xlu0 %v267, 110
  %v1435 = vpop.permute.xlu0 %1434
  %1436 = vrot.lane.b32.xlu0 %v268, 110
  %v1437 = vpop.permute.xlu0 %1436
  %vm1438 = vcmask 900096
  %v1439 = vsel %vm1438, %v1389, %v1391
  %v1440 = vsel %vm1438, %v1391, %v1393
  %v1441 = vsel %vm1438, %v1393, %v1395
  %v1442 = vsel %vm1438, %v1395, %v1397
  %v1443 = vsel %vm1438, %v1399, %v1401
  %v1444 = vsel %vm1438, %v1401, %v1403
  %v1445 = vsel %vm1438, %v1403, %v1405
  %v1446 = vsel %vm1438, %v1405, %v1407
  %v1447 = vsel %vm1438, %v1409, %v1411
  %v1448 = vsel %vm1438, %v1411, %v1413
  %v1449 = vsel %vm1438, %v1413, %v1415
  %v1450 = vsel %vm1438, %v1415, %v1417
  %v1451 = vsel %vm1438, %v1419, %v1421
  %v1452 = vsel %vm1438, %v1421, %v1423
  %v1453 = vsel %vm1438, %v1423, %v1425
  %v1454 = vsel %vm1438, %v1425, %v1427
  %v1455 = vsel %vm1438, %v1429, %v1431
  %v1456 = vsel %vm1438, %v1431, %v1433
  %v1457 = vsel %vm1438, %v1433, %v1435
  %v1458 = vsel %vm1438, %v1435, %v1437
  %v1476 = vsel %vm55, %v1387, 0
  %v1478 = vsel %vm59, %v1455, 0
  %v1480 = vsel %vm59, %v1456, 0
  %v1482 = vsel %vm59, %v1457, 0
  %v1484 = vsel %vm59, %v1458, 0
  %1486 = vmatprep.subr.mxu0 %v1440
  %1487 = vmatpush1.msra.mxu0 %v1439
  %1488 = vmatprep.subr.mxu0 %v1444
  %1489 = vmatpush1.msra.mxu0 %v1443
  %1490 = vmatprep.subr.mxu0 %v1448
  %1491 = vmatpush1.msra.mxu0 %v1447
  %1492 = vmatprep.subr.mxu0 %v1452
  %1493 = vmatpush1.msra.mxu0 %v1451
  %1494 = vmatprep.subr.mxu0 %v1480
  %1495 = vmatpush1.msra.mxu0 %v1478
  %1496 = vmatprep.subr.mxu0 0.0
  %1497 = vmatpush1.msra.mxu0 0.0
  %1498 = vmatprep.subr.mxu0 0.0
  %1499 = vmatpush1.msra.mxu0 0.0
  %1500 = vmatprep.subr.mxu0 0.0
  %1501 = vmatpush1.msra.mxu0 0.0
  %1502 = vmatprep.subr.mxu0 0.0
  %1503 = vmatpush1.msra.mxu0 0.0
  %1504 = vmatprep.subr.mxu0 0.0
  %1505 = vmatpush1.msra.mxu0 0.0
  %1506 = vmatprep.subr.mxu0 0.0
  %1507 = vmatpush1.msra.mxu0 0.0
  %1508 = vmatprep.subr.mxu0 0.0
  %1509 = vmatpush1.msra.mxu0 0.0
  %1510 = vmatprep.subr.mxu0 0.0
  %1511 = vmatpush1.msra.mxu0 0.0
  %1512 = vmatprep.subr.mxu0 0.0
  %1513 = vmatpush1.msra.mxu0 0.0
  %1514 = vmatprep.subr.mxu0 0.0
  %1515 = vmatpush1.msra.mxu0 0.0
  %1516 = vmatprep.subr.mxu0 0.0
  %1517 = vmatpush1.msra.mxu0 0.0
  %1518 = vmatprep.subr.mxu0 0.0
  %1519 = vmatpush1.msra.mxu0 0.0
  %1520 = vmatprep.subr.mxu0 0.0
  %1521 = vmatpush1.msra.mxu0 0.0
  %1522 = vmatprep.subr.mxu0 0.0
  %1523 = vmatpush1.msra.mxu0 0.0
  %1524 = vmatprep.subr.mxu0 0.0
  %1525 = vmatpush1.msra.mxu0 0.0
  %1526 = vmatprep.subr.mxu0 0.0
  %1527 = vmatpush1.msra.mxu0 0.0
  %1528 = vmatprep.subr.mxu0 0.0
  %1529 = vmatpush1.msra.mxu0 0.0
  %1530 = vmatprep.subr.mxu0 0.0
  %1531 = vmatpush1.msra.mxu0 0.0
  %1532 = vmatprep.subr.mxu0 0.0
  %1533 = vmatpush1.msra.mxu0 0.0
  %1534 = vmatprep.subr.mxu0 0.0
  %1535 = vmatpush1.msra.mxu0 0.0
  %1536 = vmatprep.subr.mxu0 0.0
  %1537 = vmatpush1.msra.mxu0 0.0
  %1538 = vmatprep.subr.mxu0 0.0
  %1539 = vmatpush1.msra.mxu0 0.0
  %1540 = vmatprep.subr.mxu0 0.0
  %1541 = vmatpush1.msra.mxu0 0.0
  %1542 = vmatprep.subr.mxu0 0.0
  %1543 = vmatpush1.msra.mxu0 0.0
  %1544 = vmatprep.subr.mxu0 0.0
  %1545 = vmatpush1.msra.mxu0 0.0
  %1546 = vmatprep.subr.mxu0 0.0
  %1547 = vmatpush1.msra.mxu0 0.0
  %1548 = vmatprep.subr.mxu0 0.0
  %1549 = vmatpush1.msra.mxu0 0.0
  %1550 = vmatprep.mubr.f32.mxu0 0.0
  %1551 = vmatmul.mubr.f32.gmra.mrb[0].mxu0 %v1476
  %v1552 = vpop.f32.mrb[0].mxu0
  %v1553 = vadd.f32 0.0, %v1552
  %v1554 = vpop.f32.mrb[0].mxu0
  %v1555 = vadd.f32 0.0, %v1554
  %1556 = vdwg.mxu0
  %1557 = vmatprep.subr.mxu0 %v1442
  %1558 = vmatpush1.msra.mxu0 %v1441
  %1559 = vmatprep.subr.mxu0 %v1446
  %1560 = vmatpush1.msra.mxu0 %v1445
  %1561 = vmatprep.subr.mxu0 %v1450
  %1562 = vmatpush1.msra.mxu0 %v1449
  %1563 = vmatprep.subr.mxu0 %v1454
  %1564 = vmatpush1.msra.mxu0 %v1453
  %1565 = vmatprep.subr.mxu0 %v1484
  %1566 = vmatpush1.msra.mxu0 %v1482
  %1567 = vmatprep.subr.mxu0 0.0
  %1568 = vmatpush1.msra.mxu0 0.0
  %1569 = vmatprep.subr.mxu0 0.0
  %1570 = vmatpush1.msra.mxu0 0.0
  %1571 = vmatprep.subr.mxu0 0.0
  %1572 = vmatpush1.msra.mxu0 0.0
  %1573 = vmatprep.subr.mxu0 0.0
  %1574 = vmatpush1.msra.mxu0 0.0
  %1575 = vmatprep.subr.mxu0 0.0
  %1576 = vmatpush1.msra.mxu0 0.0
  %1577 = vmatprep.subr.mxu0 0.0
  %1578 = vmatpush1.msra.mxu0 0.0
  %1579 = vmatprep.subr.mxu0 0.0
  %1580 = vmatpush1.msra.mxu0 0.0
  %1581 = vmatprep.subr.mxu0 0.0
  %1582 = vmatpush1.msra.mxu0 0.0
  %1583 = vmatprep.subr.mxu0 0.0
  %1584 = vmatpush1.msra.mxu0 0.0
  %1585 = vmatprep.subr.mxu0 0.0
  %1586 = vmatpush1.msra.mxu0 0.0
  %1587 = vmatprep.subr.mxu0 0.0
  %1588 = vmatpush1.msra.mxu0 0.0
  %1589 = vmatprep.subr.mxu0 0.0
  %1590 = vmatpush1.msra.mxu0 0.0
  %1591 = vmatprep.subr.mxu0 0.0
  %1592 = vmatpush1.msra.mxu0 0.0
  %1593 = vmatprep.subr.mxu0 0.0
  %1594 = vmatpush1.msra.mxu0 0.0
  %1595 = vmatprep.subr.mxu0 0.0
  %1596 = vmatpush1.msra.mxu0 0.0
  %1597 = vmatprep.subr.mxu0 0.0
  %1598 = vmatpush1.msra.mxu0 0.0
  %1599 = vmatprep.subr.mxu0 0.0
  %1600 = vmatpush1.msra.mxu0 0.0
  %1601 = vmatprep.subr.mxu0 0.0
  %1602 = vmatpush1.msra.mxu0 0.0
  %1603 = vmatprep.subr.mxu0 0.0
  %1604 = vmatpush1.msra.mxu0 0.0
  %1605 = vmatprep.subr.mxu0 0.0
  %1606 = vmatpush1.msra.mxu0 0.0
  %1607 = vmatprep.subr.mxu0 0.0
  %1608 = vmatpush1.msra.mxu0 0.0
  %1609 = vmatprep.subr.mxu0 0.0
  %1610 = vmatpush1.msra.mxu0 0.0
  %1611 = vmatprep.subr.mxu0 0.0
  %1612 = vmatpush1.msra.mxu0 0.0
  %1613 = vmatprep.subr.mxu0 0.0
  %1614 = vmatpush1.msra.mxu0 0.0
  %1615 = vmatprep.subr.mxu0 0.0
  %1616 = vmatpush1.msra.mxu0 0.0
  %1617 = vmatprep.subr.mxu0 0.0
  %1618 = vmatpush1.msra.mxu0 0.0
  %1619 = vmatprep.subr.mxu0 0.0
  %1620 = vmatpush1.msra.mxu0 0.0
  %1621 = vmatprep.mubr.f32.mxu0 0.0
  %1622 = vmatmul.mubr.f32.gmra.mrb[0].mxu0 %v1476
  %v1623 = vpop.f32.mrb[0].mxu0
  %v1624 = vadd.f32 0.0, %v1623
  %v1625 = vpop.f32.mrb[0].mxu0
  %v1626 = vadd.f32 0.0, %v1625
  %1627 = vdwg.mxu0
  %s1628 = scalar_lea.vmem %s6, 20
  %v1629 = vld [vmem:[%s1628] sm:$0xf]
  %v1631 = vlaneseq
  %v1632 = vshrl.u32 %v1631, 7
  %v1633 = vsub.s32 0, %v1632
  %v1634 = vrot.slane %v1629, %v1633
  %v1635 = vlaneseq
  %v1636 = vshrl.u32 %v1635, 7
  %v1637 = vsub.s32 1, %v1636
  %v1638 = vrot.slane %v1629, %v1637
  %v1639 = vlaneseq
  %v1640 = vshrl.u32 %v1639, 7
  %v1641 = vsub.s32 2, %v1640
  %v1642 = vrot.slane %v1629, %v1641
  %v1643 = vlaneseq
  %v1644 = vshrl.u32 %v1643, 7
  %v1645 = vsub.s32 3, %v1644
  %v1646 = vrot.slane %v1629, %v1645
  %v1651 = vmul.f32 %v1553, %v1634
  %v1652 = vmul.f32 %v1555, %v1638
  %v1653 = vmul.f32 %v1624, %v1642
  %v1654 = vmul.f32 %v1626, %v1646
  %v1655 = vadd.f32 %v1382, %v1651
  %v1656 = vadd.f32 %v1383, %v1652
  %v1657 = vadd.f32 %v1384, %v1653
  %v1658 = vadd.f32 %v1385, %v1654
  %s1659 = scalar_lea.vmem %s2, 24
  %v1660 = vld [vmem:[%s1659] sm:$0xf]
  %1661 = vrot.lane.b32.xlu0 %v244, 96
  %v1662 = vpop.permute.xlu0 %1661
  %1663 = vrot.lane.b32.xlu0 %v245, 96
  %v1664 = vpop.permute.xlu0 %1663
  %1665 = vrot.lane.b32.xlu0 %v246, 96
  %v1666 = vpop.permute.xlu0 %1665
  %1667 = vrot.lane.b32.xlu0 %v247, 96
  %v1668 = vpop.permute.xlu0 %1667
  %1669 = vrot.lane.b32.xlu0 %v248, 96
  %v1670 = vpop.permute.xlu0 %1669
  %1671 = vrot.lane.b32.xlu0 %v249, 96
  %v1672 = vpop.permute.xlu0 %1671
  %1673 = vrot.lane.b32.xlu0 %v250, 96
  %v1674 = vpop.permute.xlu0 %1673
  %1675 = vrot.lane.b32.xlu0 %v251, 96
  %v1676 = vpop.permute.xlu0 %1675
  %1677 = vrot.lane.b32.xlu0 %v252, 96
  %v1678 = vpop.permute.xlu0 %1677
  %1679 = vrot.lane.b32.xlu0 %v253, 96
  %v1680 = vpop.permute.xlu0 %1679
  %1681 = vrot.lane.b32.xlu0 %v254, 96
  %v1682 = vpop.permute.xlu0 %1681
  %1683 = vrot.lane.b32.xlu0 %v255, 96
  %v1684 = vpop.permute.xlu0 %1683
  %1685 = vrot.lane.b32.xlu0 %v256, 96
  %v1686 = vpop.permute.xlu0 %1685
  %1687 = vrot.lane.b32.xlu0 %v257, 96
  %v1688 = vpop.permute.xlu0 %1687
  %1689 = vrot.lane.b32.xlu0 %v258, 96
  %v1690 = vpop.permute.xlu0 %1689
  %1691 = vrot.lane.b32.xlu0 %v259, 96
  %v1692 = vpop.permute.xlu0 %1691
  %1693 = vrot.lane.b32.xlu0 %v260, 96
  %v1694 = vpop.permute.xlu0 %1693
  %1695 = vrot.lane.b32.xlu0 %v261, 96
  %v1696 = vpop.permute.xlu0 %1695
  %1697 = vrot.lane.b32.xlu0 %v262, 96
  %v1698 = vpop.permute.xlu0 %1697
  %1699 = vrot.lane.b32.xlu0 %v263, 96
  %v1700 = vpop.permute.xlu0 %1699
  %1701 = vrot.lane.b32.xlu0 %v264, 96
  %v1702 = vpop.permute.xlu0 %1701
  %1703 = vrot.lane.b32.xlu0 %v265, 96
  %v1704 = vpop.permute.xlu0 %1703
  %1705 = vrot.lane.b32.xlu0 %v266, 96
  %v1706 = vpop.permute.xlu0 %1705
  %1707 = vrot.lane.b32.xlu0 %v267, 96
  %v1708 = vpop.permute.xlu0 %1707
  %1709 = vrot.lane.b32.xlu0 %v268, 96
  %v1710 = vpop.permute.xlu0 %1709
  %vm1711 = vcmask 785408
  %v1712 = vsel %vm1711, %v1662, %v1664
  %v1713 = vsel %vm1711, %v1664, %v1666
  %v1714 = vsel %vm1711, %v1666, %v1668
  %v1715 = vsel %vm1711, %v1668, %v1670
  %v1716 = vsel %vm1711, %v1672, %v1674
  %v1717 = vsel %vm1711, %v1674, %v1676
  %v1718 = vsel %vm1711, %v1676, %v1678
  %v1719 = vsel %vm1711, %v1678, %v1680
  %v1720 = vsel %vm1711, %v1682, %v1684
  %v1721 = vsel %vm1711, %v1684, %v1686
  %v1722 = vsel %vm1711, %v1686, %v1688
  %v1723 = vsel %vm1711, %v1688, %v1690
  %v1724 = vsel %vm1711, %v1692, %v1694
  %v1725 = vsel %vm1711, %v1694, %v1696
  %v1726 = vsel %vm1711, %v1696, %v1698
  %v1727 = vsel %vm1711, %v1698, %v1700
  %v1728 = vsel %vm1711, %v1702, %v1704
  %v1729 = vsel %vm1711, %v1704, %v1706
  %v1730 = vsel %vm1711, %v1706, %v1708
  %v1731 = vsel %vm1711, %v1708, %v1710
  %v1749 = vsel %vm55, %v1660, 0
  %v1751 = vsel %vm59, %v1728, 0
  %v1753 = vsel %vm59, %v1729, 0
  %v1755 = vsel %vm59, %v1730, 0
  %v1757 = vsel %vm59, %v1731, 0
  %1759 = vmatprep.subr.mxu0 %v1713
  %1760 = vmatpush1.msra.mxu0 %v1712
  %1761 = vmatprep.subr.mxu0 %v1717
  %1762 = vmatpush1.msra.mxu0 %v1716
  %1763 = vmatprep.subr.mxu0 %v1721
  %1764 = vmatpush1.msra.mxu0 %v1720
  %1765 = vmatprep.subr.mxu0 %v1725
  %1766 = vmatpush1.msra.mxu0 %v1724
  %1767 = vmatprep.subr.mxu0 %v1753
  %1768 = vmatpush1.msra.mxu0 %v1751
  %1769 = vmatprep.subr.mxu0 0.0
  %1770 = vmatpush1.msra.mxu0 0.0
  %1771 = vmatprep.subr.mxu0 0.0
  %1772 = vmatpush1.msra.mxu0 0.0
  %1773 = vmatprep.subr.mxu0 0.0
  %1774 = vmatpush1.msra.mxu0 0.0
  %1775 = vmatprep.subr.mxu0 0.0
  %1776 = vmatpush1.msra.mxu0 0.0
  %1777 = vmatprep.subr.mxu0 0.0
  %1778 = vmatpush1.msra.mxu0 0.0
  %1779 = vmatprep.subr.mxu0 0.0
  %1780 = vmatpush1.msra.mxu0 0.0
  %1781 = vmatprep.subr.mxu0 0.0
  %1782 = vmatpush1.msra.mxu0 0.0
  %1783 = vmatprep.subr.mxu0 0.0
  %1784 = vmatpush1.msra.mxu0 0.0
  %1785 = vmatprep.subr.mxu0 0.0
  %1786 = vmatpush1.msra.mxu0 0.0
  %1787 = vmatprep.subr.mxu0 0.0
  %1788 = vmatpush1.msra.mxu0 0.0
  %1789 = vmatprep.subr.mxu0 0.0
  %1790 = vmatpush1.msra.mxu0 0.0
  %1791 = vmatprep.subr.mxu0 0.0
  %1792 = vmatpush1.msra.mxu0 0.0
  %1793 = vmatprep.subr.mxu0 0.0
  %1794 = vmatpush1.msra.mxu0 0.0
  %1795 = vmatprep.subr.mxu0 0.0
  %1796 = vmatpush1.msra.mxu0 0.0
  %1797 = vmatprep.subr.mxu0 0.0
  %1798 = vmatpush1.msra.mxu0 0.0
  %1799 = vmatprep.subr.mxu0 0.0
  %1800 = vmatpush1.msra.mxu0 0.0
  %1801 = vmatprep.subr.mxu0 0.0
  %1802 = vmatpush1.msra.mxu0 0.0
  %1803 = vmatprep.subr.mxu0 0.0
  %1804 = vmatpush1.msra.mxu0 0.0
  %1805 = vmatprep.subr.mxu0 0.0
  %1806 = vmatpush1.msra.mxu0 0.0
  %1807 = vmatprep.subr.mxu0 0.0
  %1808 = vmatpush1.msra.mxu0 0.0
  %1809 = vmatprep.subr.mxu0 0.0
  %1810 = vmatpush1.msra.mxu0 0.0
  %1811 = vmatprep.subr.mxu0 0.0
  %1812 = vmatpush1.msra.mxu0 0.0
  %1813 = vmatprep.subr.mxu0 0.0
  %1814 = vmatpush1.msra.mxu0 0.0
  %1815 = vmatprep.subr.mxu0 0.0
  %1816 = vmatpush1.msra.mxu0 0.0
  %1817 = vmatprep.subr.mxu0 0.0
  %1818 = vmatpush1.msra.mxu0 0.0
  %1819 = vmatprep.subr.mxu0 0.0
  %1820 = vmatpush1.msra.mxu0 0.0
  %1821 = vmatprep.subr.mxu0 0.0
  %1822 = vmatpush1.msra.mxu0 0.0
  %1823 = vmatprep.mubr.f32.mxu0 0.0
  %1824 = vmatmul.mubr.f32.gmra.mrb[0].mxu0 %v1749
  %v1825 = vpop.f32.mrb[0].mxu0
  %v1826 = vadd.f32 0.0, %v1825
  %v1827 = vpop.f32.mrb[0].mxu0
  %v1828 = vadd.f32 0.0, %v1827
  %1829 = vdwg.mxu0
  %1830 = vmatprep.subr.mxu0 %v1715
  %1831 = vmatpush1.msra.mxu0 %v1714
  %1832 = vmatprep.subr.mxu0 %v1719
  %1833 = vmatpush1.msra.mxu0 %v1718
  %1834 = vmatprep.subr.mxu0 %v1723
  %1835 = vmatpush1.msra.mxu0 %v1722
  %1836 = vmatprep.subr.mxu0 %v1727
  %1837 = vmatpush1.msra.mxu0 %v1726
  %1838 = vmatprep.subr.mxu0 %v1757
  %1839 = vmatpush1.msra.mxu0 %v1755
  %1840 = vmatprep.subr.mxu0 0.0
  %1841 = vmatpush1.msra.mxu0 0.0
  %1842 = vmatprep.subr.mxu0 0.0
  %1843 = vmatpush1.msra.mxu0 0.0
  %1844 = vmatprep.subr.mxu0 0.0
  %1845 = vmatpush1.msra.mxu0 0.0
  %1846 = vmatprep.subr.mxu0 0.0
  %1847 = vmatpush1.msra.mxu0 0.0
  %1848 = vmatprep.subr.mxu0 0.0
  %1849 = vmatpush1.msra.mxu0 0.0
  %1850 = vmatprep.subr.mxu0 0.0
  %1851 = vmatpush1.msra.mxu0 0.0
  %1852 = vmatprep.subr.mxu0 0.0
  %1853 = vmatpush1.msra.mxu0 0.0
  %1854 = vmatprep.subr.mxu0 0.0
  %1855 = vmatpush1.msra.mxu0 0.0
  %1856 = vmatprep.subr.mxu0 0.0
  %1857 = vmatpush1.msra.mxu0 0.0
  %1858 = vmatprep.subr.mxu0 0.0
  %1859 = vmatpush1.msra.mxu0 0.0
  %1860 = vmatprep.subr.mxu0 0.0
  %1861 = vmatpush1.msra.mxu0 0.0
  %1862 = vmatprep.subr.mxu0 0.0
  %1863 = vmatpush1.msra.mxu0 0.0
  %1864 = vmatprep.subr.mxu0 0.0
  %1865 = vmatpush1.msra.mxu0 0.0
  %1866 = vmatprep.subr.mxu0 0.0
  %1867 = vmatpush1.msra.mxu0 0.0
  %1868 = vmatprep.subr.mxu0 0.0
  %1869 = vmatpush1.msra.mxu0 0.0
  %1870 = vmatprep.subr.mxu0 0.0
  %1871 = vmatpush1.msra.mxu0 0.0
  %1872 = vmatprep.subr.mxu0 0.0
  %1873 = vmatpush1.msra.mxu0 0.0
  %1874 = vmatprep.subr.mxu0 0.0
  %1875 = vmatpush1.msra.mxu0 0.0
  %1876 = vmatprep.subr.mxu0 0.0
  %1877 = vmatpush1.msra.mxu0 0.0
  %1878 = vmatprep.subr.mxu0 0.0
  %1879 = vmatpush1.msra.mxu0 0.0
  %1880 = vmatprep.subr.mxu0 0.0
  %1881 = vmatpush1.msra.mxu0 0.0
  %1882 = vmatprep.subr.mxu0 0.0
  %1883 = vmatpush1.msra.mxu0 0.0
  %1884 = vmatprep.subr.mxu0 0.0
  %1885 = vmatpush1.msra.mxu0 0.0
  %1886 = vmatprep.subr.mxu0 0.0
  %1887 = vmatpush1.msra.mxu0 0.0
  %1888 = vmatprep.subr.mxu0 0.0
  %1889 = vmatpush1.msra.mxu0 0.0
  %1890 = vmatprep.subr.mxu0 0.0
  %1891 = vmatpush1.msra.mxu0 0.0
  %1892 = vmatprep.subr.mxu0 0.0
  %1893 = vmatpush1.msra.mxu0 0.0
  %1894 = vmatprep.mubr.f32.mxu0 0.0
  %1895 = vmatmul.mubr.f32.gmra.mrb[0].mxu0 %v1749
  %v1896 = vpop.f32.mrb[0].mxu0
  %v1897 = vadd.f32 0.0, %v1896
  %v1898 = vpop.f32.mrb[0].mxu0
  %v1899 = vadd.f32 0.0, %v1898
  %1900 = vdwg.mxu0
  %s1901 = scalar_lea.vmem %s6, 24
  %v1902 = vld [vmem:[%s1901] sm:$0xf]
  %v1904 = vlaneseq
  %v1905 = vshrl.u32 %v1904, 7
  %v1906 = vsub.s32 0, %v1905
  %v1907 = vrot.slane %v1902, %v1906
  %v1908 = vlaneseq
  %v1909 = vshrl.u32 %v1908, 7
  %v1910 = vsub.s32 1, %v1909
  %v1911 = vrot.slane %v1902, %v1910
  %v1912 = vlaneseq
  %v1913 = vshrl.u32 %v1912, 7
  %v1914 = vsub.s32 2, %v1913
  %v1915 = vrot.slane %v1902, %v1914
  %v1916 = vlaneseq
  %v1917 = vshrl.u32 %v1916, 7
  %v1918 = vsub.s32 3, %v1917
  %v1919 = vrot.slane %v1902, %v1918
  %v1924 = vmul.f32 %v1826, %v1907
  %v1925 = vmul.f32 %v1828, %v1911
  %v1926 = vmul.f32 %v1897, %v1915
  %v1927 = vmul.f32 %v1899, %v1919
  %v1928 = vadd.f32 %v1655, %v1924
  %v1929 = vadd.f32 %v1656, %v1925
  %v1930 = vadd.f32 %v1657, %v1926
  %v1931 = vadd.f32 %v1658, %v1927
  %s1932 = scalar_lea.vmem %s2, 28
  %v1933 = vld [vmem:[%s1932] sm:$0xf]
  %1934 = vrot.lane.b32.xlu0 %v244, 95
  %v1935 = vpop.permute.xlu0 %1934
  %1936 = vrot.lane.b32.xlu0 %v245, 95
  %v1937 = vpop.permute.xlu0 %1936
  %1938 = vrot.lane.b32.xlu0 %v246, 95
  %v1939 = vpop.permute.xlu0 %1938
  %1940 = vrot.lane.b32.xlu0 %v247, 95
  %v1941 = vpop.permute.xlu0 %1940
  %1942 = vrot.lane.b32.xlu0 %v248, 95
  %v1943 = vpop.permute.xlu0 %1942
  %1944 = vrot.lane.b32.xlu0 %v249, 95
  %v1945 = vpop.permute.xlu0 %1944
  %1946 = vrot.lane.b32.xlu0 %v250, 95
  %v1947 = vpop.permute.xlu0 %1946
  %1948 = vrot.lane.b32.xlu0 %v251, 95
  %v1949 = vpop.permute.xlu0 %1948
  %1950 = vrot.lane.b32.xlu0 %v252, 95
  %v1951 = vpop.permute.xlu0 %1950
  %1952 = vrot.lane.b32.xlu0 %v253, 95
  %v1953 = vpop.permute.xlu0 %1952
  %1954 = vrot.lane.b32.xlu0 %v254, 95
  %v1955 = vpop.permute.xlu0 %1954
  %1956 = vrot.lane.b32.xlu0 %v255, 95
  %v1957 = vpop.permute.xlu0 %1956
  %1958 = vrot.lane.b32.xlu0 %v256, 95
  %v1959 = vpop.permute.xlu0 %1958
  %1960 = vrot.lane.b32.xlu0 %v257, 95
  %v1961 = vpop.permute.xlu0 %1960
  %1962 = vrot.lane.b32.xlu0 %v258, 95
  %v1963 = vpop.permute.xlu0 %1962
  %1964 = vrot.lane.b32.xlu0 %v259, 95
  %v1965 = vpop.permute.xlu0 %1964
  %1966 = vrot.lane.b32.xlu0 %v260, 95
  %v1967 = vpop.permute.xlu0 %1966
  %1968 = vrot.lane.b32.xlu0 %v261, 95
  %v1969 = vpop.permute.xlu0 %1968
  %1970 = vrot.lane.b32.xlu0 %v262, 95
  %v1971 = vpop.permute.xlu0 %1970
  %1972 = vrot.lane.b32.xlu0 %v263, 95
  %v1973 = vpop.permute.xlu0 %1972
  %1974 = vrot.lane.b32.xlu0 %v264, 95
  %v1975 = vpop.permute.xlu0 %1974
  %1976 = vrot.lane.b32.xlu0 %v265, 95
  %v1977 = vpop.permute.xlu0 %1976
  %1978 = vrot.lane.b32.xlu0 %v266, 95
  %v1979 = vpop.permute.xlu0 %1978
  %1980 = vrot.lane.b32.xlu0 %v267, 95
  %v1981 = vpop.permute.xlu0 %1980
  %1982 = vrot.lane.b32.xlu0 %v268, 95
  %v1983 = vpop.permute.xlu0 %1982
  %vm1984 = vcmask 777216
  %v1985 = vsel %vm1984, %v1935, %v1937
  %v1986 = vsel %vm1984, %v1937, %v1939
  %v1987 = vsel %vm1984, %v1939, %v1941
  %v1988 = vsel %vm1984, %v1941, %v1943
  %v1989 = vsel %vm1984, %v1945, %v1947
  %v1990 = vsel %vm1984, %v1947, %v1949
  %v1991 = vsel %vm1984, %v1949, %v1951
  %v1992 = vsel %vm1984, %v1951, %v1953
  %v1993 = vsel %vm1984, %v1955, %v1957
  %v1994 = vsel %vm1984, %v1957, %v1959
  %v1995 = vsel %vm1984, %v1959, %v1961
  %v1996 = vsel %vm1984, %v1961, %v1963
  %v1997 = vsel %vm1984, %v1965, %v1967
  %v1998 = vsel %vm1984, %v1967, %v1969
  %v1999 = vsel %vm1984, %v1969, %v1971
  %v2000 = vsel %vm1984, %v1971, %v1973
  %v2001 = vsel %vm1984, %v1975, %v1977
  %v2002 = vsel %vm1984, %v1977, %v1979
  %v2003 = vsel %vm1984, %v1979, %v1981
  %v2004 = vsel %vm1984, %v1981, %v1983
  %v2022 = vsel %vm55, %v1933, 0
  %v2024 = vsel %vm59, %v2001, 0
  %v2026 = vsel %vm59, %v2002, 0
  %v2028 = vsel %vm59, %v2003, 0
  %v2030 = vsel %vm59, %v2004, 0
  %2032 = vmatprep.subr.mxu0 %v1986
  %2033 = vmatpush1.msra.mxu0 %v1985
  %2034 = vmatprep.subr.mxu0 %v1990
  %2035 = vmatpush1.msra.mxu0 %v1989
  %2036 = vmatprep.subr.mxu0 %v1994
  %2037 = vmatpush1.msra.mxu0 %v1993
  %2038 = vmatprep.subr.mxu0 %v1998
  %2039 = vmatpush1.msra.mxu0 %v1997
  %2040 = vmatprep.subr.mxu0 %v2026
  %2041 = vmatpush1.msra.mxu0 %v2024
  %2042 = vmatprep.subr.mxu0 0.0
  %2043 = vmatpush1.msra.mxu0 0.0
  %2044 = vmatprep.subr.mxu0 0.0
  %2045 = vmatpush1.msra.mxu0 0.0
  %2046 = vmatprep.subr.mxu0 0.0
  %2047 = vmatpush1.msra.mxu0 0.0
  %2048 = vmatprep.subr.mxu0 0.0
  %2049 = vmatpush1.msra.mxu0 0.0
  %2050 = vmatprep.subr.mxu0 0.0
  %2051 = vmatpush1.msra.mxu0 0.0
  %2052 = vmatprep.subr.mxu0 0.0
  %2053 = vmatpush1.msra.mxu0 0.0
  %2054 = vmatprep.subr.mxu0 0.0
  %2055 = vmatpush1.msra.mxu0 0.0
  %2056 = vmatprep.subr.mxu0 0.0
  %2057 = vmatpush1.msra.mxu0 0.0
  %2058 = vmatprep.subr.mxu0 0.0
  %2059 = vmatpush1.msra.mxu0 0.0
  %2060 = vmatprep.subr.mxu0 0.0
  %2061 = vmatpush1.msra.mxu0 0.0
  %2062 = vmatprep.subr.mxu0 0.0
  %2063 = vmatpush1.msra.mxu0 0.0
  %2064 = vmatprep.subr.mxu0 0.0
  %2065 = vmatpush1.msra.mxu0 0.0
  %2066 = vmatprep.subr.mxu0 0.0
  %2067 = vmatpush1.msra.mxu0 0.0
  %2068 = vmatprep.subr.mxu0 0.0
  %2069 = vmatpush1.msra.mxu0 0.0
  %2070 = vmatprep.subr.mxu0 0.0
  %2071 = vmatpush1.msra.mxu0 0.0
  %2072 = vmatprep.subr.mxu0 0.0
  %2073 = vmatpush1.msra.mxu0 0.0
  %2074 = vmatprep.subr.mxu0 0.0
  %2075 = vmatpush1.msra.mxu0 0.0
  %2076 = vmatprep.subr.mxu0 0.0
  %2077 = vmatpush1.msra.mxu0 0.0
  %2078 = vmatprep.subr.mxu0 0.0
  %2079 = vmatpush1.msra.mxu0 0.0
  %2080 = vmatprep.subr.mxu0 0.0
  %2081 = vmatpush1.msra.mxu0 0.0
  %2082 = vmatprep.subr.mxu0 0.0
  %2083 = vmatpush1.msra.mxu0 0.0
  %2084 = vmatprep.subr.mxu0 0.0
  %2085 = vmatpush1.msra.mxu0 0.0
  %2086 = vmatprep.subr.mxu0 0.0
  %2087 = vmatpush1.msra.mxu0 0.0
  %2088 = vmatprep.subr.mxu0 0.0
  %2089 = vmatpush1.msra.mxu0 0.0
  %2090 = vmatprep.subr.mxu0 0.0
  %2091 = vmatpush1.msra.mxu0 0.0
  %2092 = vmatprep.subr.mxu0 0.0
  %2093 = vmatpush1.msra.mxu0 0.0
  %2094 = vmatprep.subr.mxu0 0.0
  %2095 = vmatpush1.msra.mxu0 0.0
  %2096 = vmatprep.mubr.f32.mxu0 0.0
  %2097 = vmatmul.mubr.f32.gmra.mrb[0].mxu0 %v2022
  %v2098 = vpop.f32.mrb[0].mxu0
  %v2099 = vadd.f32 0.0, %v2098
  %v2100 = vpop.f32.mrb[0].mxu0
  %v2101 = vadd.f32 0.0, %v2100
  %2102 = vdwg.mxu0
  %2103 = vmatprep.subr.mxu0 %v1988
  %2104 = vmatpush1.msra.mxu0 %v1987
  %2105 = vmatprep.subr.mxu0 %v1992
  %2106 = vmatpush1.msra.mxu0 %v1991
  %2107 = vmatprep.subr.mxu0 %v1996
  %2108 = vmatpush1.msra.mxu0 %v1995
  %2109 = vmatprep.subr.mxu0 %v2000
  %2110 = vmatpush1.msra.mxu0 %v1999
  %2111 = vmatprep.subr.mxu0 %v2030
  %2112 = vmatpush1.msra.mxu0 %v2028
  %2113 = vmatprep.subr.mxu0 0.0
  %2114 = vmatpush1.msra.mxu0 0.0
  %2115 = vmatprep.subr.mxu0 0.0
  %2116 = vmatpush1.msra.mxu0 0.0
  %2117 = vmatprep.subr.mxu0 0.0
  %2118 = vmatpush1.msra.mxu0 0.0
  %2119 = vmatprep.subr.mxu0 0.0
  %2120 = vmatpush1.msra.mxu0 0.0
  %2121 = vmatprep.subr.mxu0 0.0
  %2122 = vmatpush1.msra.mxu0 0.0
  %2123 = vmatprep.subr.mxu0 0.0
  %2124 = vmatpush1.msra.mxu0 0.0
  %2125 = vmatprep.subr.mxu0 0.0
  %2126 = vmatpush1.msra.mxu0 0.0
  %2127 = vmatprep.subr.mxu0 0.0
  %2128 = vmatpush1.msra.mxu0 0.0
  %2129 = vmatprep.subr.mxu0 0.0
  %2130 = vmatpush1.msra.mxu0 0.0
  %2131 = vmatprep.subr.mxu0 0.0
  %2132 = vmatpush1.msra.mxu0 0.0
  %2133 = vmatprep.subr.mxu0 0.0
  %2134 = vmatpush1.msra.mxu0 0.0
  %2135 = vmatprep.subr.mxu0 0.0
  %2136 = vmatpush1.msra.mxu0 0.0
  %2137 = vmatprep.subr.mxu0 0.0
  %2138 = vmatpush1.msra.mxu0 0.0
  %2139 = vmatprep.subr.mxu0 0.0
  %2140 = vmatpush1.msra.mxu0 0.0
  %2141 = vmatprep.subr.mxu0 0.0
  %2142 = vmatpush1.msra.mxu0 0.0
  %2143 = vmatprep.subr.mxu0 0.0
  %2144 = vmatpush1.msra.mxu0 0.0
  %2145 = vmatprep.subr.mxu0 0.0
  %2146 = vmatpush1.msra.mxu0 0.0
  %2147 = vmatprep.subr.mxu0 0.0
  %2148 = vmatpush1.msra.mxu0 0.0
  %2149 = vmatprep.subr.mxu0 0.0
  %2150 = vmatpush1.msra.mxu0 0.0
  %2151 = vmatprep.subr.mxu0 0.0
  %2152 = vmatpush1.msra.mxu0 0.0
  %2153 = vmatprep.subr.mxu0 0.0
  %2154 = vmatpush1.msra.mxu0 0.0
  %2155 = vmatprep.subr.mxu0 0.0
  %2156 = vmatpush1.msra.mxu0 0.0
  %2157 = vmatprep.subr.mxu0 0.0
  %2158 = vmatpush1.msra.mxu0 0.0
  %2159 = vmatprep.subr.mxu0 0.0
  %2160 = vmatpush1.msra.mxu0 0.0
  %2161 = vmatprep.subr.mxu0 0.0
  %2162 = vmatpush1.msra.mxu0 0.0
  %2163 = vmatprep.subr.mxu0 0.0
  %2164 = vmatpush1.msra.mxu0 0.0
  %2165 = vmatprep.subr.mxu0 0.0
  %2166 = vmatpush1.msra.mxu0 0.0
  %2167 = vmatprep.mubr.f32.mxu0 0.0
  %2168 = vmatmul.mubr.f32.gmra.mrb[0].mxu0 %v2022
  %v2169 = vpop.f32.mrb[0].mxu0
  %v2170 = vadd.f32 0.0, %v2169
  %v2171 = vpop.f32.mrb[0].mxu0
  %v2172 = vadd.f32 0.0, %v2171
  %2173 = vdwg.mxu0
  %s2174 = scalar_lea.vmem %s6, 28
  %v2175 = vld [vmem:[%s2174] sm:$0xf]
  %v2177 = vlaneseq
  %v2178 = vshrl.u32 %v2177, 7
  %v2179 = vsub.s32 0, %v2178
  %v2180 = vrot.slane %v2175, %v2179
  %v2181 = vlaneseq
  %v2182 = vshrl.u32 %v2181, 7
  %v2183 = vsub.s32 1, %v2182
  %v2184 = vrot.slane %v2175, %v2183
  %v2185 = vlaneseq
  %v2186 = vshrl.u32 %v2185, 7
  %v2187 = vsub.s32 2, %v2186
  %v2188 = vrot.slane %v2175, %v2187
  %v2189 = vlaneseq
  %v2190 = vshrl.u32 %v2189, 7
  %v2191 = vsub.s32 3, %v2190
  %v2192 = vrot.slane %v2175, %v2191
  %v2197 = vmul.f32 %v2099, %v2180
  %v2198 = vmul.f32 %v2101, %v2184
  %v2199 = vmul.f32 %v2170, %v2188
  %v2200 = vmul.f32 %v2172, %v2192
  %v2201 = vadd.f32 %v1928, %v2197
  %v2202 = vadd.f32 %v1929, %v2198
  %v2203 = vadd.f32 %v1930, %v2199
  %v2204 = vadd.f32 %v1931, %v2200
  %s2205 = scalar_lea.vmem %s2, 32
  %v2206 = vld [vmem:[%s2205] sm:$0xf]
  %2207 = vrot.lane.b32.xlu0 %v244, 94
  %v2208 = vpop.permute.xlu0 %2207
  %2209 = vrot.lane.b32.xlu0 %v245, 94
  %v2210 = vpop.permute.xlu0 %2209
  %2211 = vrot.lane.b32.xlu0 %v246, 94
  %v2212 = vpop.permute.xlu0 %2211
  %2213 = vrot.lane.b32.xlu0 %v247, 94
  %v2214 = vpop.permute.xlu0 %2213
  %2215 = vrot.lane.b32.xlu0 %v248, 94
  %v2216 = vpop.permute.xlu0 %2215
  %2217 = vrot.lane.b32.xlu0 %v249, 94
  %v2218 = vpop.permute.xlu0 %2217
  %2219 = vrot.lane.b32.xlu0 %v250, 94
  %v2220 = vpop.permute.xlu0 %2219
  %2221 = vrot.lane.b32.xlu0 %v251, 94
  %v2222 = vpop.permute.xlu0 %2221
  %2223 = vrot.lane.b32.xlu0 %v252, 94
  %v2224 = vpop.permute.xlu0 %2223
  %2225 = vrot.lane.b32.xlu0 %v253, 94
  %v2226 = vpop.permute.xlu0 %2225
  %2227 = vrot.lane.b32.xlu0 %v254, 94
  %v2228 = vpop.permute.xlu0 %2227
  %2229 = vrot.lane.b32.xlu0 %v255, 94
  %v2230 = vpop.permute.xlu0 %2229
  %2231 = vrot.lane.b32.xlu0 %v256, 94
  %v2232 = vpop.permute.xlu0 %2231
  %2233 = vrot.lane.b32.xlu0 %v257, 94
  %v2234 = vpop.permute.xlu0 %2233
  %2235 = vrot.lane.b32.xlu0 %v258, 94
  %v2236 = vpop.permute.xlu0 %2235
  %2237 = vrot.lane.b32.xlu0 %v259, 94
  %v2238 = vpop.permute.xlu0 %2237
  %2239 = vrot.lane.b32.xlu0 %v260, 94
  %v2240 = vpop.permute.xlu0 %2239
  %2241 = vrot.lane.b32.xlu0 %v261, 94
  %v2242 = vpop.permute.xlu0 %2241
  %2243 = vrot.lane.b32.xlu0 %v262, 94
  %v2244 = vpop.permute.xlu0 %2243
  %2245 = vrot.lane.b32.xlu0 %v263, 94
  %v2246 = vpop.permute.xlu0 %2245
  %2247 = vrot.lane.b32.xlu0 %v264, 94
  %v2248 = vpop.permute.xlu0 %2247
  %2249 = vrot.lane.b32.xlu0 %v265, 94
  %v2250 = vpop.permute.xlu0 %2249
  %2251 = vrot.lane.b32.xlu0 %v266, 94
  %v2252 = vpop.permute.xlu0 %2251
  %2253 = vrot.lane.b32.xlu0 %v267, 94
  %v2254 = vpop.permute.xlu0 %2253
  %2255 = vrot.lane.b32.xlu0 %v268, 94
  %v2256 = vpop.permute.xlu0 %2255
  %vm2257 = vcmask 769024
  %v2258 = vsel %vm2257, %v2208, %v2210
  %v2259 = vsel %vm2257, %v2210, %v2212
  %v2260 = vsel %vm2257, %v2212, %v2214
  %v2261 = vsel %vm2257, %v2214, %v2216
  %v2262 = vsel %vm2257, %v2218, %v2220
  %v2263 = vsel %vm2257, %v2220, %v2222
  %v2264 = vsel %vm2257, %v2222, %v2224
  %v2265 = vsel %vm2257, %v2224, %v2226
  %v2266 = vsel %vm2257, %v2228, %v2230
  %v2267 = vsel %vm2257, %v2230, %v2232
  %v2268 = vsel %vm2257, %v2232, %v2234
  %v2269 = vsel %vm2257, %v2234, %v2236
  %v2270 = vsel %vm2257, %v2238, %v2240
  %v2271 = vsel %vm2257, %v2240, %v2242
  %v2272 = vsel %vm2257, %v2242, %v2244
  %v2273 = vsel %vm2257, %v2244, %v2246
  %v2274 = vsel %vm2257, %v2248, %v2250
  %v2275 = vsel %vm2257, %v2250, %v2252
  %v2276 = vsel %vm2257, %v2252, %v2254
  %v2277 = vsel %vm2257, %v2254, %v2256
  %v2295 = vsel %vm55, %v2206, 0
  %v2297 = vsel %vm59, %v2274, 0
  %v2299 = vsel %vm59, %v2275, 0
  %v2301 = vsel %vm59, %v2276, 0
  %v2303 = vsel %vm59, %v2277, 0
  %2305 = vmatprep.subr.mxu0 %v2259
  %2306 = vmatpush1.msra.mxu0 %v2258
  %2307 = vmatprep.subr.mxu0 %v2263
  %2308 = vmatpush1.msra.mxu0 %v2262
  %2309 = vmatprep.subr.mxu0 %v2267
  %2310 = vmatpush1.msra.mxu0 %v2266
  %2311 = vmatprep.subr.mxu0 %v2271
  %2312 = vmatpush1.msra.mxu0 %v2270
  %2313 = vmatprep.subr.mxu0 %v2299
  %2314 = vmatpush1.msra.mxu0 %v2297
  %2315 = vmatprep.subr.mxu0 0.0
  %2316 = vmatpush1.msra.mxu0 0.0
  %2317 = vmatprep.subr.mxu0 0.0
  %2318 = vmatpush1.msra.mxu0 0.0
  %2319 = vmatprep.subr.mxu0 0.0
  %2320 = vmatpush1.msra.mxu0 0.0
  %2321 = vmatprep.subr.mxu0 0.0
  %2322 = vmatpush1.msra.mxu0 0.0
  %2323 = vmatprep.subr.mxu0 0.0
  %2324 = vmatpush1.msra.mxu0 0.0
  %2325 = vmatprep.subr.mxu0 0.0
  %2326 = vmatpush1.msra.mxu0 0.0
  %2327 = vmatprep.subr.mxu0 0.0
  %2328 = vmatpush1.msra.mxu0 0.0
  %2329 = vmatprep.subr.mxu0 0.0
  %2330 = vmatpush1.msra.mxu0 0.0
  %2331 = vmatprep.subr.mxu0 0.0
  %2332 = vmatpush1.msra.mxu0 0.0
  %2333 = vmatprep.subr.mxu0 0.0
  %2334 = vmatpush1.msra.mxu0 0.0
  %2335 = vmatprep.subr.mxu0 0.0
  %2336 = vmatpush1.msra.mxu0 0.0
  %2337 = vmatprep.subr.mxu0 0.0
  %2338 = vmatpush1.msra.mxu0 0.0
  %2339 = vmatprep.subr.mxu0 0.0
  %2340 = vmatpush1.msra.mxu0 0.0
  %2341 = vmatprep.subr.mxu0 0.0
  %2342 = vmatpush1.msra.mxu0 0.0
  %2343 = vmatprep.subr.mxu0 0.0
  %2344 = vmatpush1.msra.mxu0 0.0
  %2345 = vmatprep.subr.mxu0 0.0
  %2346 = vmatpush1.msra.mxu0 0.0
  %2347 = vmatprep.subr.mxu0 0.0
  %2348 = vmatpush1.msra.mxu0 0.0
  %2349 = vmatprep.subr.mxu0 0.0
  %2350 = vmatpush1.msra.mxu0 0.0
  %2351 = vmatprep.subr.mxu0 0.0
  %2352 = vmatpush1.msra.mxu0 0.0
  %2353 = vmatprep.subr.mxu0 0.0
  %2354 = vmatpush1.msra.mxu0 0.0
  %2355 = vmatprep.subr.mxu0 0.0
  %2356 = vmatpush1.msra.mxu0 0.0
  %2357 = vmatprep.subr.mxu0 0.0
  %2358 = vmatpush1.msra.mxu0 0.0
  %2359 = vmatprep.subr.mxu0 0.0
  %2360 = vmatpush1.msra.mxu0 0.0
  %2361 = vmatprep.subr.mxu0 0.0
  %2362 = vmatpush1.msra.mxu0 0.0
  %2363 = vmatprep.subr.mxu0 0.0
  %2364 = vmatpush1.msra.mxu0 0.0
  %2365 = vmatprep.subr.mxu0 0.0
  %2366 = vmatpush1.msra.mxu0 0.0
  %2367 = vmatprep.subr.mxu0 0.0
  %2368 = vmatpush1.msra.mxu0 0.0
  %2369 = vmatprep.mubr.f32.mxu0 0.0
  %2370 = vmatmul.mubr.f32.gmra.mrb[0].mxu0 %v2295
  %v2371 = vpop.f32.mrb[0].mxu0
  %v2372 = vadd.f32 0.0, %v2371
  %v2373 = vpop.f32.mrb[0].mxu0
  %v2374 = vadd.f32 0.0, %v2373
  %2375 = vdwg.mxu0
  %2376 = vmatprep.subr.mxu0 %v2261
  %2377 = vmatpush1.msra.mxu0 %v2260
  %2378 = vmatprep.subr.mxu0 %v2265
  %2379 = vmatpush1.msra.mxu0 %v2264
  %2380 = vmatprep.subr.mxu0 %v2269
  %2381 = vmatpush1.msra.mxu0 %v2268
  %2382 = vmatprep.subr.mxu0 %v2273
  %2383 = vmatpush1.msra.mxu0 %v2272
  %2384 = vmatprep.subr.mxu0 %v2303
  %2385 = vmatpush1.msra.mxu0 %v2301
  %2386 = vmatprep.subr.mxu0 0.0
  %2387 = vmatpush1.msra.mxu0 0.0
  %2388 = vmatprep.subr.mxu0 0.0
  %2389 = vmatpush1.msra.mxu0 0.0
  %2390 = vmatprep.subr.mxu0 0.0
  %2391 = vmatpush1.msra.mxu0 0.0
  %2392 = vmatprep.subr.mxu0 0.0
  %2393 = vmatpush1.msra.mxu0 0.0
  %2394 = vmatprep.subr.mxu0 0.0
  %2395 = vmatpush1.msra.mxu0 0.0
  %2396 = vmatprep.subr.mxu0 0.0
  %2397 = vmatpush1.msra.mxu0 0.0
  %2398 = vmatprep.subr.mxu0 0.0
  %2399 = vmatpush1.msra.mxu0 0.0
  %2400 = vmatprep.subr.mxu0 0.0
  %2401 = vmatpush1.msra.mxu0 0.0
  %2402 = vmatprep.subr.mxu0 0.0
  %2403 = vmatpush1.msra.mxu0 0.0
  %2404 = vmatprep.subr.mxu0 0.0
  %2405 = vmatpush1.msra.mxu0 0.0
  %2406 = vmatprep.subr.mxu0 0.0
  %2407 = vmatpush1.msra.mxu0 0.0
  %2408 = vmatprep.subr.mxu0 0.0
  %2409 = vmatpush1.msra.mxu0 0.0
  %2410 = vmatprep.subr.mxu0 0.0
  %2411 = vmatpush1.msra.mxu0 0.0
  %2412 = vmatprep.subr.mxu0 0.0
  %2413 = vmatpush1.msra.mxu0 0.0
  %2414 = vmatprep.subr.mxu0 0.0
  %2415 = vmatpush1.msra.mxu0 0.0
  %2416 = vmatprep.subr.mxu0 0.0
  %2417 = vmatpush1.msra.mxu0 0.0
  %2418 = vmatprep.subr.mxu0 0.0
  %2419 = vmatpush1.msra.mxu0 0.0
  %2420 = vmatprep.subr.mxu0 0.0
  %2421 = vmatpush1.msra.mxu0 0.0
  %2422 = vmatprep.subr.mxu0 0.0
  %2423 = vmatpush1.msra.mxu0 0.0
  %2424 = vmatprep.subr.mxu0 0.0
  %2425 = vmatpush1.msra.mxu0 0.0
  %2426 = vmatprep.subr.mxu0 0.0
  %2427 = vmatpush1.msra.mxu0 0.0
  %2428 = vmatprep.subr.mxu0 0.0
  %2429 = vmatpush1.msra.mxu0 0.0
  %2430 = vmatprep.subr.mxu0 0.0
  %2431 = vmatpush1.msra.mxu0 0.0
  %2432 = vmatprep.subr.mxu0 0.0
  %2433 = vmatpush1.msra.mxu0 0.0
  %2434 = vmatprep.subr.mxu0 0.0
  %2435 = vmatpush1.msra.mxu0 0.0
  %2436 = vmatprep.subr.mxu0 0.0
  %2437 = vmatpush1.msra.mxu0 0.0
  %2438 = vmatprep.subr.mxu0 0.0
  %2439 = vmatpush1.msra.mxu0 0.0
  %2440 = vmatprep.mubr.f32.mxu0 0.0
  %2441 = vmatmul.mubr.f32.gmra.mrb[0].mxu0 %v2295
  %v2442 = vpop.f32.mrb[0].mxu0
  %v2443 = vadd.f32 0.0, %v2442
  %v2444 = vpop.f32.mrb[0].mxu0
  %v2445 = vadd.f32 0.0, %v2444
  %2446 = vdwg.mxu0
  %s2447 = scalar_lea.vmem %s6, 32
  %v2448 = vld [vmem:[%s2447] sm:$0xf]
  %v2450 = vlaneseq
  %v2451 = vshrl.u32 %v2450, 7
  %v2452 = vsub.s32 0, %v2451
  %v2453 = vrot.slane %v2448, %v2452
  %v2454 = vlaneseq
  %v2455 = vshrl.u32 %v2454, 7
  %v2456 = vsub.s32 1, %v2455
  %v2457 = vrot.slane %v2448, %v2456
  %v2458 = vlaneseq
  %v2459 = vshrl.u32 %v2458, 7
  %v2460 = vsub.s32 2, %v2459
  %v2461 = vrot.slane %v2448, %v2460
  %v2462 = vlaneseq
  %v2463 = vshrl.u32 %v2462, 7
  %v2464 = vsub.s32 3, %v2463
  %v2465 = vrot.slane %v2448, %v2464
  %v2470 = vmul.f32 %v2372, %v2453
  %v2471 = vmul.f32 %v2374, %v2457
  %v2472 = vmul.f32 %v2443, %v2461
  %v2473 = vmul.f32 %v2445, %v2465
  %v2474 = vadd.f32 %v2201, %v2470
  %v2475 = vadd.f32 %v2202, %v2471
  %v2476 = vadd.f32 %v2203, %v2472
  %v2477 = vadd.f32 %v2204, %v2473
  %2479 = vset.pattern.permute.xlu0 0
  %2480 = vperm.xlu0 %2479, %v31
  %v2481 = vpop.permute.xlu0 %2480
  %v2483 = vadd.f32 %v2474, %v2481
  %v2484 = vadd.f32 %v2475, %v2481
  %v2485 = vadd.f32 %v2476, %v2481
  %v2486 = vadd.f32 %v2477, %v2481
  %v2487 = vld [vmem:[%s1] sm:$0xf]
  %v2489 = vlaneseq
  %v2490 = vshrl.u32 %v2489, 7
  %v2491 = vsub.s32 0, %v2490
  %v2492 = vrot.slane %v2487, %v2491
  %v2493 = vlaneseq
  %v2494 = vshrl.u32 %v2493, 7
  %v2495 = vsub.s32 1, %v2494
  %v2496 = vrot.slane %v2487, %v2495
  %v2497 = vlaneseq
  %v2498 = vshrl.u32 %v2497, 7
  %v2499 = vsub.s32 2, %v2498
  %v2500 = vrot.slane %v2487, %v2499
  %v2501 = vlaneseq
  %v2502 = vshrl.u32 %v2501, 7
  %v2503 = vsub.s32 3, %v2502
  %v2504 = vrot.slane %v2487, %v2503
  %v2509 = vmul.f32 %v2483, %v2492
  %v2510 = vmul.f32 %v2484, %v2496
  %v2511 = vmul.f32 %v2485, %v2500
  %v2512 = vmul.f32 %v2486, %v2504
  %v2517 = vcombine.low %v2509, %v2510
  %v2518 = vcombine.low %v2511, %v2512
  %2521 = vst [vmem:[%s8] sm:$0xff] %v2517
  %2522 = vst [vmem:[%s8 + $0x8] sm:$0xff] %v2518
  %v2523 = vmax.f32 %v2509, 0.0
  %v2524 = vmax.f32 %v2510, 0.0
  %v2525 = vmax.f32 %v2511, 0.0
  %v2526 = vmax.f32 %v2512, 0.0
  %vm2527 = vcmask 31744
  %v2529 = vsel %vm2527, %v32, 0
  %v2532 = vsel %vm59, %v2523, 0
  %v2535 = vsel %vm59, %v2524, 0
  %v2538 = vsel %vm59, %v2525, 0
  %v2541 = vsel %vm59, %v2526, 0
  %2543 = vmatprep.subr.mxu0 %v2535
  %2544 = vmatpush1.msra.mxu0 %v2532
  %2545 = vmatprep.subr.mxu0 0.0
  %2546 = vmatpush1.msra.mxu0 0.0
  %2547 = vmatprep.subr.mxu0 0.0
  %2548 = vmatpush1.msra.mxu0 0.0
  %2549 = vmatprep.subr.mxu0 0.0
  %2550 = vmatpush1.msra.mxu0 0.0
  %2551 = vmatprep.subr.mxu0 0.0
  %2552 = vmatpush1.msra.mxu0 0.0
  %2553 = vmatprep.subr.mxu0 0.0
  %2554 = vmatpush1.msra.mxu0 0.0
  %2555 = vmatprep.subr.mxu0 0.0
  %2556 = vmatpush1.msra.mxu0 0.0
  %2557 = vmatprep.subr.mxu0 0.0
  %2558 = vmatpush1.msra.mxu0 0.0
  %2559 = vmatprep.subr.mxu0 0.0
  %2560 = vmatpush1.msra.mxu0 0.0
  %2561 = vmatprep.subr.mxu0 0.0
  %2562 = vmatpush1.msra.mxu0 0.0
  %2563 = vmatprep.subr.mxu0 0.0
  %2564 = vmatpush1.msra.mxu0 0.0
  %2565 = vmatprep.subr.mxu0 0.0
  %2566 = vmatpush1.msra.mxu0 0.0
  %2567 = vmatprep.subr.mxu0 0.0
  %2568 = vmatpush1.msra.mxu0 0.0
  %2569 = vmatprep.subr.mxu0 0.0
  %2570 = vmatpush1.msra.mxu0 0.0
  %2571 = vmatprep.subr.mxu0 0.0
  %2572 = vmatpush1.msra.mxu0 0.0
  %2573 = vmatprep.subr.mxu0 0.0
  %2574 = vmatpush1.msra.mxu0 0.0
  %2575 = vmatprep.subr.mxu0 0.0
  %2576 = vmatpush1.msra.mxu0 0.0
  %2577 = vmatprep.subr.mxu0 0.0
  %2578 = vmatpush1.msra.mxu0 0.0
  %2579 = vmatprep.subr.mxu0 0.0
  %2580 = vmatpush1.msra.mxu0 0.0
  %2581 = vmatprep.subr.mxu0 0.0
  %2582 = vmatpush1.msra.mxu0 0.0
  %2583 = vmatprep.subr.mxu0 0.0
  %2584 = vmatpush1.msra.mxu0 0.0
  %2585 = vmatprep.subr.mxu0 0.0
  %2586 = vmatpush1.msra.mxu0 0.0
  %2587 = vmatprep.subr.mxu0 0.0
  %2588 = vmatpush1.msra.mxu0 0.0
  %2589 = vmatprep.subr.mxu0 0.0
  %2590 = vmatpush1.msra.mxu0 0.0
  %2591 = vmatprep.subr.mxu0 0.0
  %2592 = vmatpush1.msra.mxu0 0.0
  %2593 = vmatprep.subr.mxu0 0.0
  %2594 = vmatpush1.msra.mxu0 0.0
  %2595 = vmatprep.subr.mxu0 0.0
  %2596 = vmatpush1.msra.mxu0 0.0
  %2597 = vmatprep.subr.mxu0 0.0
  %2598 = vmatpush1.msra.mxu0 0.0
  %2599 = vmatprep.subr.mxu0 0.0
  %2600 = vmatpush1.msra.mxu0 0.0
  %2601 = vmatprep.subr.mxu0 0.0
  %2602 = vmatpush1.msra.mxu0 0.0
  %2603 = vmatprep.subr.mxu0 0.0
  %2604 = vmatpush1.msra.mxu0 0.0
  %2605 = vmatprep.subr.mxu0 0.0
  %2606 = vmatpush1.msra.mxu0 0.0
  %2607 = vmatprep.mubr.f32.mxu0 0.0
  %2608 = vmatmul.mubr.f32.gmra.mrb[0].mxu0 %v2529
  %v2609 = vpop.f32.mrb[0].mxu0
  %v2610 = vadd.f32 0.0, %v2609
  %v2611 = vpop.f32.mrb[0].mxu0
  %v2612 = vadd.f32 0.0, %v2611
  %2613 = vdwg.mxu0
  %2614 = vmatprep.subr.mxu0 %v2541
  %2615 = vmatpush1.msra.mxu0 %v2538
  %2616 = vmatprep.subr.mxu0 0.0
  %2617 = vmatpush1.msra.mxu0 0.0
  %2618 = vmatprep.subr.mxu0 0.0
  %2619 = vmatpush1.msra.mxu0 0.0
  %2620 = vmatprep.subr.mxu0 0.0
  %2621 = vmatpush1.msra.mxu0 0.0
  %2622 = vmatprep.subr.mxu0 0.0
  %2623 = vmatpush1.msra.mxu0 0.0
  %2624 = vmatprep.subr.mxu0 0.0
  %2625 = vmatpush1.msra.mxu0 0.0
  %2626 = vmatprep.subr.mxu0 0.0
  %2627 = vmatpush1.msra.mxu0 0.0
  %2628 = vmatprep.subr.mxu0 0.0
  %2629 = vmatpush1.msra.mxu0 0.0
  %2630 = vmatprep.subr.mxu0 0.0
  %2631 = vmatpush1.msra.mxu0 0.0
  %2632 = vmatprep.subr.mxu0 0.0
  %2633 = vmatpush1.msra.mxu0 0.0
  %2634 = vmatprep.subr.mxu0 0.0
  %2635 = vmatpush1.msra.mxu0 0.0
  %2636 = vmatprep.subr.mxu0 0.0
  %2637 = vmatpush1.msra.mxu0 0.0
  %2638 = vmatprep.subr.mxu0 0.0
  %2639 = vmatpush1.msra.mxu0 0.0
  %2640 = vmatprep.subr.mxu0 0.0
  %2641 = vmatpush1.msra.mxu0 0.0
  %2642 = vmatprep.subr.mxu0 0.0
  %2643 = vmatpush1.msra.mxu0 0.0
  %2644 = vmatprep.subr.mxu0 0.0
  %2645 = vmatpush1.msra.mxu0 0.0
  %2646 = vmatprep.subr.mxu0 0.0
  %2647 = vmatpush1.msra.mxu0 0.0
  %2648 = vmatprep.subr.mxu0 0.0
  %2649 = vmatpush1.msra.mxu0 0.0
  %2650 = vmatprep.subr.mxu0 0.0
  %2651 = vmatpush1.msra.mxu0 0.0
  %2652 = vmatprep.subr.mxu0 0.0
  %2653 = vmatpush1.msra.mxu0 0.0
  %2654 = vmatprep.subr.mxu0 0.0
  %2655 = vmatpush1.msra.mxu0 0.0
  %2656 = vmatprep.subr.mxu0 0.0
  %2657 = vmatpush1.msra.mxu0 0.0
  %2658 = vmatprep.subr.mxu0 0.0
  %2659 = vmatpush1.msra.mxu0 0.0
  %2660 = vmatprep.subr.mxu0 0.0
  %2661 = vmatpush1.msra.mxu0 0.0
  %2662 = vmatprep.subr.mxu0 0.0
  %2663 = vmatpush1.msra.mxu0 0.0
  %2664 = vmatprep.subr.mxu0 0.0
  %2665 = vmatpush1.msra.mxu0 0.0
  %2666 = vmatprep.subr.mxu0 0.0
  %2667 = vmatpush1.msra.mxu0 0.0
  %2668 = vmatprep.subr.mxu0 0.0
  %2669 = vmatpush1.msra.mxu0 0.0
  %2670 = vmatprep.subr.mxu0 0.0
  %2671 = vmatpush1.msra.mxu0 0.0
  %2672 = vmatprep.subr.mxu0 0.0
  %2673 = vmatpush1.msra.mxu0 0.0
  %2674 = vmatprep.subr.mxu0 0.0
  %2675 = vmatpush1.msra.mxu0 0.0
  %2676 = vmatprep.subr.mxu0 0.0
  %2677 = vmatpush1.msra.mxu0 0.0
  %2678 = vmatprep.mubr.f32.mxu0 0.0
  %2679 = vmatmul.mubr.f32.gmra.mrb[0].mxu0 %v2529
  %v2680 = vpop.f32.mrb[0].mxu0
  %v2681 = vadd.f32 0.0, %v2680
  %v2682 = vpop.f32.mrb[0].mxu0
  %v2683 = vadd.f32 0.0, %v2682
  %2684 = vdwg.mxu0
  %v2685 = vld [vmem:[%s7] sm:$0xff]
  %v2686 = vld [vmem:[%s7 + $0x8] sm:$0xff]
  %v2687 = vld [vmem:[%s7 + $0x10] sm:$0xff]
  %v2688 = vld [vmem:[%s7 + $0x18] sm:$0xff]
  %v2689 = vld [vmem:[%s7 + $0x20] sm:$0xff]
  %v2690 = vld [vmem:[%s7 + $0x28] sm:$0xff]
  %v2691 = vld [vmem:[%s7 + $0x30] sm:$0xff]
  %v2692 = vld [vmem:[%s7 + $0x38] sm:$0xff]
  %v2693 = vld [vmem:[%s7 + $0x40] sm:$0xff]
  %v2694 = vld [vmem:[%s7 + $0x48] sm:$0xff]
  %v2695 = vld [vmem:[%s7 + $0x50] sm:$0xff]
  %v2696 = vld [vmem:[%s7 + $0x58] sm:$0xff]
  %v2697 = vld [vmem:[%s7 + $0x60] sm:$0xff]
  %v2698 = vld [vmem:[%s7 + $0x68] sm:$0xff]
  %v2699 = vld [vmem:[%s7 + $0x70] sm:$0xff]
  %v2700 = vld [vmem:[%s7 + $0x78] sm:$0xff]
  %v2701 = vld [vmem:[%s7 + $0x80] sm:$0xff]
  %v2702 = vld [vmem:[%s7 + $0x88] sm:$0xff]
  %v2703 = vld [vmem:[%s7 + $0x90] sm:$0xff]
  %v2704 = vld [vmem:[%s7 + $0x98] sm:$0xff]
  %v2705 = vld [vmem:[%s7 + $0xa0] sm:$0xff]
  %v2706 = vld [vmem:[%s7 + $0xa8] sm:$0xff]
  %v2707 = vld [vmem:[%s7 + $0xb0] sm:$0xff]
  %v2708 = vld [vmem:[%s7 + $0xb8] sm:$0xff]
  %v2709 = vld [vmem:[%s7 + $0xc0] sm:$0xff]
  %v2710 = vld [vmem:[%s7 + $0xc8] sm:$0xff]
  %v2711 = vld [vmem:[%s7 + $0xd0] sm:$0xff]
  %v2712 = vld [vmem:[%s7 + $0xd8] sm:$0xff]
  %v2713 = vld [vmem:[%s7 + $0xe0] sm:$0xff]
  %v2714 = vld [vmem:[%s7 + $0xe8] sm:$0xff]
  %v2715 = vld [vmem:[%s7 + $0xf0] sm:$0xff]
  %v2716 = vld [vmem:[%s7 + $0xf8] sm:$0xff]
  %v2717 = vld [vmem:[%s7 + $0x100] sm:$0xff]
  %v2718 = vld [vmem:[%s7 + $0x108] sm:$0xff]
  %v2719 = vld [vmem:[%s7 + $0x110] sm:$0xff]
  %v2720 = vld [vmem:[%s7 + $0x118] sm:$0xff]
  %v2721 = vld [vmem:[%s7 + $0x120] sm:$0xff]
  %v2722 = vld [vmem:[%s7 + $0x128] sm:$0xff]
  %v2723 = vld [vmem:[%s7 + $0x130] sm:$0xff]
  %v2724 = vld [vmem:[%s7 + $0x138] sm:$0xff]
  %v2725 = vld [vmem:[%s7 + $0x140] sm:$0xff]
  %v2726 = vld [vmem:[%s7 + $0x148] sm:$0xff]
  %v2727 = vld [vmem:[%s7 + $0x150] sm:$0xff]
  %v2728 = vld [vmem:[%s7 + $0x158] sm:$0xff]
  %v2729 = vld [vmem:[%s7 + $0x160] sm:$0xff]
  %v2730 = vld [vmem:[%s7 + $0x168] sm:$0xff]
  %v2731 = vld [vmem:[%s7 + $0x170] sm:$0xff]
  %v2732 = vld [vmem:[%s7 + $0x178] sm:$0xff]
  %v2733 = vld [vmem:[%s7 + $0x180] sm:$0xff]
  %v2734 = vld [vmem:[%s7 + $0x188] sm:$0xff]
  %v2735 = vld [vmem:[%s7 + $0x190] sm:$0xff]
  %v2736 = vld [vmem:[%s7 + $0x198] sm:$0xff]
  %v2737 = vld [vmem:[%s7 + $0x1a0] sm:$0xff]
  %v2738 = vld [vmem:[%s7 + $0x1a8] sm:$0xff]
  %v2739 = vld [vmem:[%s7 + $0x1b0] sm:$0xff]
  %v2740 = vld [vmem:[%s7 + $0x1b8] sm:$0xff]
  %v2741 = vld [vmem:[%s7 + $0x1c0] sm:$0xff]
  %v2742 = vld [vmem:[%s7 + $0x1c8] sm:$0xff]
  %v2743 = vld [vmem:[%s7 + $0x1d0] sm:$0xff]
  %v2744 = vld [vmem:[%s7 + $0x1d8] sm:$0xff]
  %v2745 = vld [vmem:[%s7 + $0x1e0] sm:$0xff]
  %v2746 = vld [vmem:[%s7 + $0x1e8] sm:$0xff]
  %v2747 = vld [vmem:[%s7 + $0x1f0] sm:$0xff]
  %v2748 = vld [vmem:[%s7 + $0x1f8] sm:$0xff]
  %2750 = vset.pattern.permute.xlu0 0
  %2751 = vperm.xlu0 %2750, %v33
  %v2752 = vpop.permute.xlu0 %2751
  %2754 = vmatprep.subr.mxu0 0.0
  %2755 = vmatpush1.msra.mxu0 %v2685
  %2756 = vmatprep.subr.mxu0 0.0
  %2757 = vmatpush1.msra.mxu0 %v2686
  %2758 = vmatprep.subr.mxu0 0.0
  %2759 = vmatpush1.msra.mxu0 %v2687
  %2760 = vmatprep.subr.mxu0 0.0
  %2761 = vmatpush1.msra.mxu0 %v2688
  %2762 = vmatprep.subr.mxu0 0.0
  %2763 = vmatpush1.msra.mxu0 %v2689
  %2764 = vmatprep.subr.mxu0 0.0
  %2765 = vmatpush1.msra.mxu0 %v2690
  %2766 = vmatprep.subr.mxu0 0.0
  %2767 = vmatpush1.msra.mxu0 %v2691
  %2768 = vmatprep.subr.mxu0 0.0
  %2769 = vmatpush1.msra.mxu0 %v2692
  %2770 = vmatprep.subr.mxu0 0.0
  %2771 = vmatpush1.msra.mxu0 %v2693
  %2772 = vmatprep.subr.mxu0 0.0
  %2773 = vmatpush1.msra.mxu0 %v2694
  %2774 = vmatprep.subr.mxu0 0.0
  %2775 = vmatpush1.msra.mxu0 %v2695
  %2776 = vmatprep.subr.mxu0 0.0
  %2777 = vmatpush1.msra.mxu0 %v2696
  %2778 = vmatprep.subr.mxu0 0.0
  %2779 = vmatpush1.msra.mxu0 %v2697
  %2780 = vmatprep.subr.mxu0 0.0
  %2781 = vmatpush1.msra.mxu0 %v2698
  %2782 = vmatprep.subr.mxu0 0.0
  %2783 = vmatpush1.msra.mxu0 %v2699
  %2784 = vmatprep.subr.mxu0 0.0
  %2785 = vmatpush1.msra.mxu0 %v2700
  %2786 = vmatprep.subr.mxu0 0.0
  %2787 = vmatpush1.msra.mxu0 %v2701
  %2788 = vmatprep.subr.mxu0 0.0
  %2789 = vmatpush1.msra.mxu0 %v2702
  %2790 = vmatprep.subr.mxu0 0.0
  %2791 = vmatpush1.msra.mxu0 %v2703
  %2792 = vmatprep.subr.mxu0 0.0
  %2793 = vmatpush1.msra.mxu0 %v2704
  %2794 = vmatprep.subr.mxu0 0.0
  %2795 = vmatpush1.msra.mxu0 %v2705
  %2796 = vmatprep.subr.mxu0 0.0
  %2797 = vmatpush1.msra.mxu0 %v2706
  %2798 = vmatprep.subr.mxu0 0.0
  %2799 = vmatpush1.msra.mxu0 %v2707
  %2800 = vmatprep.subr.mxu0 0.0
  %2801 = vmatpush1.msra.mxu0 %v2708
  %2802 = vmatprep.subr.mxu0 0.0
  %2803 = vmatpush1.msra.mxu0 %v2709
  %2804 = vmatprep.subr.mxu0 0.0
  %2805 = vmatpush1.msra.mxu0 %v2710
  %2806 = vmatprep.subr.mxu0 0.0
  %2807 = vmatpush1.msra.mxu0 %v2711
  %2808 = vmatprep.subr.mxu0 0.0
  %2809 = vmatpush1.msra.mxu0 %v2712
  %2810 = vmatprep.subr.mxu0 0.0
  %2811 = vmatpush1.msra.mxu0 %v2713
  %2812 = vmatprep.subr.mxu0 0.0
  %2813 = vmatpush1.msra.mxu0 %v2714
  %2814 = vmatprep.subr.mxu0 0.0
  %2815 = vmatpush1.msra.mxu0 %v2715
  %2816 = vmatprep.subr.mxu0 0.0
  %2817 = vmatpush1.msra.mxu0 %v2716
  %2818 = vmatprep.mubr.f32.mxu0 %v2612
  %2819 = vmatmul.mubr.f32.gmra.mrb[0].mxu0 %v2610
  %v2820 = vpop.f32.mrb[0].mxu0
  %v2821 = vadd.f32 %v2752, %v2820
  %v2822 = vpop.f32.mrb[0].mxu0
  %2823 = vdwg.mxu0
  %2824 = vmatprep.subr.mxu0 0.0
  %2825 = vmatpush1.msra.mxu0 %v2717
  %2826 = vmatprep.subr.mxu0 0.0
  %2827 = vmatpush1.msra.mxu0 %v2718
  %2828 = vmatprep.subr.mxu0 0.0
  %2829 = vmatpush1.msra.mxu0 %v2719
  %2830 = vmatprep.subr.mxu0 0.0
  %2831 = vmatpush1.msra.mxu0 %v2720
  %2832 = vmatprep.subr.mxu0 0.0
  %2833 = vmatpush1.msra.mxu0 %v2721
  %2834 = vmatprep.subr.mxu0 0.0
  %2835 = vmatpush1.msra.mxu0 %v2722
  %2836 = vmatprep.subr.mxu0 0.0
  %2837 = vmatpush1.msra.mxu0 %v2723
  %2838 = vmatprep.subr.mxu0 0.0
  %2839 = vmatpush1.msra.mxu0 %v2724
  %2840 = vmatprep.subr.mxu0 0.0
  %2841 = vmatpush1.msra.mxu0 %v2725
  %2842 = vmatprep.subr.mxu0 0.0
  %2843 = vmatpush1.msra.mxu0 %v2726
  %2844 = vmatprep.subr.mxu0 0.0
  %2845 = vmatpush1.msra.mxu0 %v2727
  %2846 = vmatprep.subr.mxu0 0.0
  %2847 = vmatpush1.msra.mxu0 %v2728
  %2848 = vmatprep.subr.mxu0 0.0
  %2849 = vmatpush1.msra.mxu0 %v2729
  %2850 = vmatprep.subr.mxu0 0.0
  %2851 = vmatpush1.msra.mxu0 %v2730
  %2852 = vmatprep.subr.mxu0 0.0
  %2853 = vmatpush1.msra.mxu0 %v2731
  %2854 = vmatprep.subr.mxu0 0.0
  %2855 = vmatpush1.msra.mxu0 %v2732
  %2856 = vmatprep.subr.mxu0 0.0
  %2857 = vmatpush1.msra.mxu0 %v2733
  %2858 = vmatprep.subr.mxu0 0.0
  %2859 = vmatpush1.msra.mxu0 %v2734
  %2860 = vmatprep.subr.mxu0 0.0
  %2861 = vmatpush1.msra.mxu0 %v2735
  %2862 = vmatprep.subr.mxu0 0.0
  %2863 = vmatpush1.msra.mxu0 %v2736
  %2864 = vmatprep.subr.mxu0 0.0
  %2865 = vmatpush1.msra.mxu0 %v2737
  %2866 = vmatprep.subr.mxu0 0.0
  %2867 = vmatpush1.msra.mxu0 %v2738
  %2868 = vmatprep.subr.mxu0 0.0
  %2869 = vmatpush1.msra.mxu0 %v2739
  %2870 = vmatprep.subr.mxu0 0.0
  %2871 = vmatpush1.msra.mxu0 %v2740
  %2872 = vmatprep.subr.mxu0 0.0
  %2873 = vmatpush1.msra.mxu0 %v2741
  %2874 = vmatprep.subr.mxu0 0.0
  %2875 = vmatpush1.msra.mxu0 %v2742
  %2876 = vmatprep.subr.mxu0 0.0
  %2877 = vmatpush1.msra.mxu0 %v2743
  %2878 = vmatprep.subr.mxu0 0.0
  %2879 = vmatpush1.msra.mxu0 %v2744
  %2880 = vmatprep.subr.mxu0 0.0
  %2881 = vmatpush1.msra.mxu0 %v2745
  %2882 = vmatprep.subr.mxu0 0.0
  %2883 = vmatpush1.msra.mxu0 %v2746
  %2884 = vmatprep.subr.mxu0 0.0
  %2885 = vmatpush1.msra.mxu0 %v2747
  %2886 = vmatprep.subr.mxu0 0.0
  %2887 = vmatpush1.msra.mxu0 %v2748
  %2888 = vmatprep.mubr.f32.mxu0 %v2683
  %2889 = vmatmul.mubr.f32.gmra.mrb[0].mxu0 %v2681
  %v2890 = vpop.f32.mrb[0].mxu0
  %v2891 = vadd.f32 %v2821, %v2890
  %v2892 = vpop.f32.mrb[0].mxu0
  %2893 = vdwg.mxu0
  %vm2894 = vcmask 10240
  %2895 = vst.msk [vmem:[%s9] sm:$0x7] %vm2894, %v2891
  // Predicated region
  $region34: #{iter_mask_forward.1} parent=0 // pred_check
    _
  $region35: #{iter_mask_forward.1} parent=0 // pred_check_branch
    %2897 = sbr.rel (0) target = $region37
  $region36: #{iter_mask_forward.1} parent=0 // pred_region
    _
  $region37: #{iter_mask_forward.1} parent=0 // pred_fallthru
    _
  // Predicated region
  $region38: #{iter_mask_forward.1} parent=0 // pred_check
    _
  $region39: #{iter_mask_forward.1} parent=0 // pred_check_branch
    %2899 = sbr.rel (0) target = $region41
  $region40: #{iter_mask_forward.1} parent=0 // pred_region
    _
  $region41: #{iter_mask_forward.1} parent=0 // pred_fallthru
    _
  // Predicated region
  $region42: #{iter_mask_forward.1} parent=0 // pred_check
    _
  $region43: #{iter_mask_forward.1} parent=0 // pred_check_branch
    %2901 = sbr.rel (0) target = $region45
  $region44: #{iter_mask_forward.1} parent=0 // pred_region
    _
  $region45: #{iter_mask_forward.1} parent=0 // pred_fallthru
    _
  // Predicated region
  $region46: #{iter_mask_forward.1} parent=0 // pred_check
    _
  $region47: #{iter_mask_forward.1} parent=0 // pred_check_branch
    %2903 = sbr.rel (0) target = $region49
  $region48: #{iter_mask_forward.1} parent=0 // pred_region
    _
  $region49: #{iter_mask_forward.1} parent=0 // pred_fallthru
    _

</llo_original>
